<compile_context>
chip_gen: v7x
topology: tpu7x:2x2x1
jax: 0.10.0
libtpu: 0.0.40
codegen_flags: <defaults>
</compile_context>

<pallas_src>
import functools

import jax
import jax.numpy as jnp
from jax.experimental import pallas as pl
from jax.experimental.pallas import tpu as pltpu


# PyTorch gate row order is [i, f, g, o]; kernel column order is [i, f, o, g] so the three
# sigmoid-style gates are one contiguous block.  i/f/o are pre-scaled by 0.5 (tanh trick).
_GATE_PERM = (0, 1, 3, 2)          # kernel position p takes PyTorch gate _GATE_PERM[p]
_GATE_SCALE = (0.5, 0.5, 0.5, 1.0)  # sigmoid(z) = 0.5*tanh(0.5*z) + 0.5  (g stays tanh)


# ----------------------------------------------------------------------------- kernel
def lstm_kernel(x_ref, w_ref, out_ref, *, H, HP, input_size):
    """Single-program kernel: whole sequence, recurrence fully unrolled.

    x_ref : (T, input_size) f32
    w_ref : (R, 4*HP)       f32, packed rows:
              0 .. H-1            : w_hh gate-packed [i|f|o|g], i/f/o cols * 0.5
              H .. H+IS-1         : w_ih gate-packed, i/f/o cols * 0.5
              H+IS                : (b_ih + b_hh) gate-packed, i/f/o * 0.5
              H+IS+1              : linear weight row (lanes 0..H-1), output_size == 1
              H+IS+2              : linear bias (lane 0)
    out_ref: (1, OP) f32 — lane 0 holds the prediction; other lanes hold the same value
             (wrapper slices), store stays lane-dense/unmasked.
    """
    T = x_ref.shape[0]
    r_wih = H
    r_b = H + input_size
    r_wlin = H + input_size + 1
    r_blin = H + input_size + 2

    # ---- input projection for every timestep at once, bias folded (off the serial chain) ----
    b_row = w_ref[r_b:r_b + 1, :]                                       # (1, 4*HP)
    if input_size == 1:
        # K=1 matmul is a degenerate MXU pass -> VPU broadcast outer product instead.
        x_proj = x_ref[...] * w_ref[r_wih:r_wih + 1, :] + b_row         # (T, 4*HP)
    else:
        x_proj = jnp.dot(x_ref[...], w_ref[r_wih:r_wih + input_size, :],
                         preferred_element_type=jnp.float32) + b_row

    h = jnp.zeros((1, HP), jnp.float32)
    c = jnp.zeros((1, HP), jnp.float32)

    # ---- recurrence, fully unrolled (static T) ----
    # Padded lanes stay exactly 0: gate cols >= H are zero -> tanh(0)=0 -> i=f=o=0.5, g=0
    # -> c_pad = 0.5*c_pad (=0), h_pad = 0.5*tanh(0) = 0.  Hence h[:, :H] is the true state
    # and the unpadded K=H matmul below is exact.
    for t in range(T):
        gates = x_proj[t:t + 1, :] + jnp.dot(
            h[:, :H], w_ref[0:H, :], preferred_element_type=jnp.float32)   # (1, 4*HP)
        tg = jnp.tanh(gates)                       # ONE EUP pass for all 4 gates
        ifo = 0.5 * tg[:, 0:3 * HP] + 0.5          # recover sigmoid for i, f, o (single fma)
        i = ifo[:, 0 * HP:1 * HP]
        f = ifo[:, 1 * HP:2 * HP]
        o = ifo[:, 2 * HP:3 * HP]
        g = tg[:, 3 * HP:4 * HP]
        c = f * c + i * g
        h = o * jnp.tanh(c)

    # ---- final linear (output_size == 1): VPU multiply + lane reduce, no MXU epilogue ----
    wlin_row = w_ref[r_wlin:r_wlin + 1, 0:HP]                           # (1, HP)
    s = jnp.sum(h * wlin_row, axis=-1, keepdims=True)                   # (1, 1)
    out_ref[...] = (jnp.broadcast_to(s, out_ref.shape)
                    + w_ref[r_blin:r_blin + 1, 0:out_ref.shape[1]])     # lane-dense store


# ----------------------------------------------------------------------------- weight packing
def _pack_gate_matrix(w, H, HP):
    """(4H, K) PyTorch layout -> (K, 4*HP) kernel layout [i|f|o|g], i/f/o cols * 0.5."""
    K = w.shape[1]
    out = jnp.zeros((K, 4 * HP), jnp.float32)
    for pos, src in enumerate(_GATE_PERM):
        blk = jnp.transpose(w[src * H:(src + 1) * H, :]) * _GATE_SCALE[pos]
        out = out.at[:, pos * HP: pos * HP + H].set(blk)
    return out


def _pack_gate_bias(b, H, HP):
    """(4H,) PyTorch layout -> (1, 4*HP) kernel layout [i|f|o|g], i/f/o * 0.5."""
    out = jnp.zeros((1, 4 * HP), jnp.float32)
    for pos, src in enumerate(_GATE_PERM):
        out = out.at[0, pos * HP: pos * HP + H].set(b[src * H:(src + 1) * H] * _GATE_SCALE[pos])
    return out


def pack_params(params):
    """One-time packing of all weights into a single kernel operand.  Call once, reuse."""
    w_ih, w_hh, b_ih, b_hh, w_lin, b_lin = [jnp.asarray(p, jnp.float32) for p in params]
    H = w_hh.shape[1]
    input_size = w_ih.shape[1]
    out_size = w_lin.shape[0]
    assert out_size == 1, "kernel epilogue is specialised to the module's output_size=1"
    HP = ((H + 127) // 128) * 128                 # lane-aligned per-gate width

    n_rows = H + input_size + 3                   # whh | wih | bias | wlin | blin
    R = ((n_rows + 7) // 8) * 8                   # sublane-aligned row count
    wpack = jnp.zeros((R, 4 * HP), jnp.float32)
    wpack = wpack.at[0:H, :].set(_pack_gate_matrix(w_hh, H, HP))
    wpack = wpack.at[H:H + input_size, :].set(_pack_gate_matrix(w_ih, H, HP))
    wpack = wpack.at[H + input_size, :].set(_pack_gate_bias(b_ih + b_hh, H, HP)[0])
    wpack = wpack.at[H + input_size + 1, 0:H].set(w_lin[0, :])
    wpack = wpack.at[H + input_size + 2, 0].set(b_lin[0])

    meta = dict(H=H, HP=HP, input_size=input_size, out_size=out_size)
    return wpack, meta


# ----------------------------------------------------------------------------- wrapper
def lstm_forward(input_seq, wpack, *, H, HP, input_size, out_size):
    """Equivalent of LSTM.forward(input_seq) -> predictions[-1], shape (output_size,)."""
    x2d = input_seq.reshape(-1, input_size).astype(jnp.float32)            # (T, input_size)
    OP = 128                                                               # lane-dense output

    out = pl.pallas_call(
        functools.partial(lstm_kernel, H=H, HP=HP, input_size=input_size),
        out_shape=jax.ShapeDtypeStruct((1, OP), jnp.float32),
        in_specs=[pl.BlockSpec(memory_space=pltpu.MemorySpace.VMEM),
                  pl.BlockSpec(memory_space=pltpu.MemorySpace.VMEM)],
        out_specs=pl.BlockSpec(memory_space=pltpu.MemorySpace.VMEM),
    )(x2d, wpack)
    return out[0, :out_size]                                               # (output_size,)


# ----------------------------------------------------------------------------- reference
def lstm_ref(input_seq, params):
    """Pure-JAX reference of the PyTorch module (gate order i, f, g, o)."""
    w_ih, w_hh, b_ih, b_hh, w_lin, b_lin = params
    hidden = w_hh.shape[1]
    input_size = w_ih.shape[1]
    x2d = input_seq.reshape(-1, input_size).astype(jnp.float32)

    def step(carry, x_t):
        h, c = carry
        gates = x_t @ w_ih.T + b_ih + h @ w_hh.T + b_hh
        i = jax.nn.sigmoid(gates[0 * hidden:1 * hidden])
        f = jax.nn.sigmoid(gates[1 * hidden:2 * hidden])
        g = jnp.tanh(gates[2 * hidden:3 * hidden])
        o = jax.nn.sigmoid(gates[3 * hidden:4 * hidden])
        c = f * c + i * g
        h = o * jnp.tanh(c)
        return (h, c), h

    h0 = jnp.zeros((hidden,), jnp.float32)
    c0 = jnp.zeros((hidden,), jnp.float32)
    (h_last, _), _ = jax.lax.scan(step, (h0, c0), x2d)
    return h_last @ w_lin.T + b_lin                                        # (output_size,)


# ----------------------------------------------------------------------------- params
def init_params(key, input_size, hidden, output_size):
    """Deterministic init, same shapes as nn.LSTM / nn.Linear (uniform +/- 1/sqrt(H))."""
    k = 1.0 / jnp.sqrt(jnp.float32(hidden))
    ks = jax.random.split(key, 6)
    u = lambda kk, shape: jax.random.uniform(kk, shape, jnp.float32, minval=-k, maxval=k)
    w_ih = u(ks[0], (4 * hidden, input_size))   # lstm.weight_ih_l0
    w_hh = u(ks[1], (4 * hidden, hidden))       # lstm.weight_hh_l0
    b_ih = u(ks[2], (4 * hidden,))              # lstm.bias_ih_l0
    b_hh = u(ks[3], (4 * hidden,))              # lstm.bias_hh_l0
    w_lin = u(ks[4], (output_size, hidden))     # linear.weight
    b_lin = u(ks[5], (output_size,))            # linear.bias
    return (w_ih, w_hh, b_ih, b_hh, w_lin, b_lin)


if __name__ == "__main__":
    # Small shapes consistent with the module usage: seq=8, input_size=1, hidden=32, output=1.
    T, INPUT, HIDDEN, OUTPUT = 8, 1, 32, 1

    key = jax.random.PRNGKey(0)
    k_x, k_p = jax.random.split(key)
    input_seq = jax.random.normal(k_x, (T,), jnp.float32)   # 1-D sequence, like the torch usage
    params = init_params(k_p, INPUT, HIDDEN, OUTPUT)

    # Pack weights ONCE (hoisted out of the per-call path); jit only the kernel wrapper.
    wpack, meta = pack_params(params)
    wpack = jax.block_until_ready(wpack)
    fwd = jax.jit(functools.partial(lstm_forward, **meta))

    pred = fwd(input_seq, wpack)
    pred = jax.block_until_ready(pred)

    ref = lstm_ref(input_seq, params)
    assert pred.shape == (OUTPUT,)
    assert jnp.allclose(pred, ref, atol=1e-5, rtol=1e-5), (pred, ref)

    print("KERNEL_OK")
</pallas_src>

<mosaic_0001>
module attributes {stable_mosaic.version = 11 : i64} {
  func.func @lstm_kernel(%arg0: memref<8x1xf32, #tpu.memory_space<vmem>>, %arg1: memref<40x512xf32, #tpu.memory_space<vmem>>, %arg2: memref<1x128xf32, #tpu.memory_space<vmem>>) attributes {dimension_semantics = [], scalar_prefetch = 0 : i64, scratch_operands = 0 : i64, tpu.core_type = #tpu.core_type<tc>} {
    %c33 = arith.constant 33 : index
    %c0 = arith.constant 0 : index
    %0 = vector.load %arg1[%c33, %c0] : memref<40x512xf32, #tpu.memory_space<vmem>>, vector<1x512xf32>
    %c0_0 = arith.constant 0 : index
    %c0_1 = arith.constant 0 : index
    %1 = vector.load %arg0[%c0_0, %c0_1] : memref<8x1xf32, #tpu.memory_space<vmem>>, vector<8x1xf32>
    %c32 = arith.constant 32 : index
    %c0_2 = arith.constant 0 : index
    %2 = vector.load %arg1[%c32, %c0_2] : memref<40x512xf32, #tpu.memory_space<vmem>>, vector<1x512xf32>
    %3 = vector.broadcast %1 : vector<8x1xf32> to vector<8x512xf32>
    %4 = vector.broadcast %2 : vector<1x512xf32> to vector<8x512xf32>
    %5 = arith.mulf %3, %4 : vector<8x512xf32>
    %6 = vector.broadcast %0 : vector<1x512xf32> to vector<8x512xf32>
    %7 = arith.addf %5, %6 : vector<8x512xf32>
    %cst = arith.constant 0.000000e+00 : f32
    %8 = vector.broadcast %cst : f32 to vector<1x128xf32>
    %cst_3 = arith.constant 0.000000e+00 : f32
    %9 = vector.broadcast %cst_3 : f32 to vector<1x128xf32>
    %10 = vector.extract_strided_slice %7 {offsets = [0, 0], sizes = [1, 512], strides = [1, 1]} : vector<8x512xf32> to vector<1x512xf32>
    %11 = vector.extract_strided_slice %8 {offsets = [0, 0], sizes = [1, 32], strides = [1, 1]} : vector<1x128xf32> to vector<1x32xf32>
    %c0_4 = arith.constant 0 : index
    %c0_5 = arith.constant 0 : index
    %12 = vector.load %arg1[%c0_4, %c0_5] : memref<40x512xf32, #tpu.memory_space<vmem>>, vector<32x512xf32>
    %cst_6 = arith.constant dense<0.000000e+00> : vector<1x512xf32>
    %13 = tpu.matmul %11, %12, %cst_6 {dimension_numbers = #tpu.dot_dimension_numbers<[1], [0], [0], [1], [0, 0, 1, 1], [], []>} : vector<1x32xf32>, vector<32x512xf32>, vector<1x512xf32> -> vector<1x512xf32>
    %14 = arith.addf %10, %13 : vector<1x512xf32>
    %15 = math.tanh %14 : vector<1x512xf32>
    %16 = vector.extract_strided_slice %15 {offsets = [0, 0], sizes = [1, 384], strides = [1, 1]} : vector<1x512xf32> to vector<1x384xf32>
    %cst_7 = arith.constant 5.000000e-01 : f32
    %17 = vector.broadcast %cst_7 : f32 to vector<1x384xf32>
    %18 = arith.mulf %17, %16 : vector<1x384xf32>
    %cst_8 = arith.constant 5.000000e-01 : f32
    %19 = vector.broadcast %cst_8 : f32 to vector<1x384xf32>
    %20 = arith.addf %18, %19 : vector<1x384xf32>
    %21 = vector.extract_strided_slice %20 {offsets = [0, 0], sizes = [1, 128], strides = [1, 1]} : vector<1x384xf32> to vector<1x128xf32>
    %22 = vector.extract_strided_slice %20 {offsets = [0, 128], sizes = [1, 128], strides = [1, 1]} : vector<1x384xf32> to vector<1x128xf32>
    %23 = vector.extract_strided_slice %20 {offsets = [0, 256], sizes = [1, 128], strides = [1, 1]} : vector<1x384xf32> to vector<1x128xf32>
    %24 = vector.extract_strided_slice %15 {offsets = [0, 384], sizes = [1, 128], strides = [1, 1]} : vector<1x512xf32> to vector<1x128xf32>
    %25 = arith.mulf %22, %9 : vector<1x128xf32>
    %26 = arith.mulf %21, %24 : vector<1x128xf32>
    %27 = arith.addf %25, %26 : vector<1x128xf32>
    %28 = math.tanh %27 : vector<1x128xf32>
    %29 = arith.mulf %23, %28 : vector<1x128xf32>
    %30 = vector.extract_strided_slice %7 {offsets = [1, 0], sizes = [1, 512], strides = [1, 1]} : vector<8x512xf32> to vector<1x512xf32>
    %31 = vector.extract_strided_slice %29 {offsets = [0, 0], sizes = [1, 32], strides = [1, 1]} : vector<1x128xf32> to vector<1x32xf32>
    %c0_9 = arith.constant 0 : index
    %c0_10 = arith.constant 0 : index
    %32 = vector.load %arg1[%c0_9, %c0_10] : memref<40x512xf32, #tpu.memory_space<vmem>>, vector<32x512xf32>
    %cst_11 = arith.constant dense<0.000000e+00> : vector<1x512xf32>
    %33 = tpu.matmul %31, %32, %cst_11 {dimension_numbers = #tpu.dot_dimension_numbers<[1], [0], [0], [1], [0, 0, 1, 1], [], []>} : vector<1x32xf32>, vector<32x512xf32>, vector<1x512xf32> -> vector<1x512xf32>
    %34 = arith.addf %30, %33 : vector<1x512xf32>
    %35 = math.tanh %34 : vector<1x512xf32>
    %36 = vector.extract_strided_slice %35 {offsets = [0, 0], sizes = [1, 384], strides = [1, 1]} : vector<1x512xf32> to vector<1x384xf32>
    %cst_12 = arith.constant 5.000000e-01 : f32
    %37 = vector.broadcast %cst_12 : f32 to vector<1x384xf32>
    %38 = arith.mulf %37, %36 : vector<1x384xf32>
    %cst_13 = arith.constant 5.000000e-01 : f32
    %39 = vector.broadcast %cst_13 : f32 to vector<1x384xf32>
    %40 = arith.addf %38, %39 : vector<1x384xf32>
    %41 = vector.extract_strided_slice %40 {offsets = [0, 0], sizes = [1, 128], strides = [1, 1]} : vector<1x384xf32> to vector<1x128xf32>
    %42 = vector.extract_strided_slice %40 {offsets = [0, 128], sizes = [1, 128], strides = [1, 1]} : vector<1x384xf32> to vector<1x128xf32>
    %43 = vector.extract_strided_slice %40 {offsets = [0, 256], sizes = [1, 128], strides = [1, 1]} : vector<1x384xf32> to vector<1x128xf32>
    %44 = vector.extract_strided_slice %35 {offsets = [0, 384], sizes = [1, 128], strides = [1, 1]} : vector<1x512xf32> to vector<1x128xf32>
    %45 = arith.mulf %42, %27 : vector<1x128xf32>
    %46 = arith.mulf %41, %44 : vector<1x128xf32>
    %47 = arith.addf %45, %46 : vector<1x128xf32>
    %48 = math.tanh %47 : vector<1x128xf32>
    %49 = arith.mulf %43, %48 : vector<1x128xf32>
    %50 = vector.extract_strided_slice %7 {offsets = [2, 0], sizes = [1, 512], strides = [1, 1]} : vector<8x512xf32> to vector<1x512xf32>
    %51 = vector.extract_strided_slice %49 {offsets = [0, 0], sizes = [1, 32], strides = [1, 1]} : vector<1x128xf32> to vector<1x32xf32>
    %c0_14 = arith.constant 0 : index
    %c0_15 = arith.constant 0 : index
    %52 = vector.load %arg1[%c0_14, %c0_15] : memref<40x512xf32, #tpu.memory_space<vmem>>, vector<32x512xf32>
    %cst_16 = arith.constant dense<0.000000e+00> : vector<1x512xf32>
    %53 = tpu.matmul %51, %52, %cst_16 {dimension_numbers = #tpu.dot_dimension_numbers<[1], [0], [0], [1], [0, 0, 1, 1], [], []>} : vector<1x32xf32>, vector<32x512xf32>, vector<1x512xf32> -> vector<1x512xf32>
    %54 = arith.addf %50, %53 : vector<1x512xf32>
    %55 = math.tanh %54 : vector<1x512xf32>
    %56 = vector.extract_strided_slice %55 {offsets = [0, 0], sizes = [1, 384], strides = [1, 1]} : vector<1x512xf32> to vector<1x384xf32>
    %cst_17 = arith.constant 5.000000e-01 : f32
    %57 = vector.broadcast %cst_17 : f32 to vector<1x384xf32>
    %58 = arith.mulf %57, %56 : vector<1x384xf32>
    %cst_18 = arith.constant 5.000000e-01 : f32
    %59 = vector.broadcast %cst_18 : f32 to vector<1x384xf32>
    %60 = arith.addf %58, %59 : vector<1x384xf32>
    %61 = vector.extract_strided_slice %60 {offsets = [0, 0], sizes = [1, 128], strides = [1, 1]} : vector<1x384xf32> to vector<1x128xf32>
    %62 = vector.extract_strided_slice %60 {offsets = [0, 128], sizes = [1, 128], strides = [1, 1]} : vector<1x384xf32> to vector<1x128xf32>
    %63 = vector.extract_strided_slice %60 {offsets = [0, 256], sizes = [1, 128], strides = [1, 1]} : vector<1x384xf32> to vector<1x128xf32>
    %64 = vector.extract_strided_slice %55 {offsets = [0, 384], sizes = [1, 128], strides = [1, 1]} : vector<1x512xf32> to vector<1x128xf32>
    %65 = arith.mulf %62, %47 : vector<1x128xf32>
    %66 = arith.mulf %61, %64 : vector<1x128xf32>
    %67 = arith.addf %65, %66 : vector<1x128xf32>
    %68 = math.tanh %67 : vector<1x128xf32>
    %69 = arith.mulf %63, %68 : vector<1x128xf32>
    %70 = vector.extract_strided_slice %7 {offsets = [3, 0], sizes = [1, 512], strides = [1, 1]} : vector<8x512xf32> to vector<1x512xf32>
    %71 = vector.extract_strided_slice %69 {offsets = [0, 0], sizes = [1, 32], strides = [1, 1]} : vector<1x128xf32> to vector<1x32xf32>
    %c0_19 = arith.constant 0 : index
    %c0_20 = arith.constant 0 : index
    %72 = vector.load %arg1[%c0_19, %c0_20] : memref<40x512xf32, #tpu.memory_space<vmem>>, vector<32x512xf32>
    %cst_21 = arith.constant dense<0.000000e+00> : vector<1x512xf32>
    %73 = tpu.matmul %71, %72, %cst_21 {dimension_numbers = #tpu.dot_dimension_numbers<[1], [0], [0], [1], [0, 0, 1, 1], [], []>} : vector<1x32xf32>, vector<32x512xf32>, vector<1x512xf32> -> vector<1x512xf32>
    %74 = arith.addf %70, %73 : vector<1x512xf32>
    %75 = math.tanh %74 : vector<1x512xf32>
    %76 = vector.extract_strided_slice %75 {offsets = [0, 0], sizes = [1, 384], strides = [1, 1]} : vector<1x512xf32> to vector<1x384xf32>
    %cst_22 = arith.constant 5.000000e-01 : f32
    %77 = vector.broadcast %cst_22 : f32 to vector<1x384xf32>
    %78 = arith.mulf %77, %76 : vector<1x384xf32>
    %cst_23 = arith.constant 5.000000e-01 : f32
    %79 = vector.broadcast %cst_23 : f32 to vector<1x384xf32>
    %80 = arith.addf %78, %79 : vector<1x384xf32>
    %81 = vector.extract_strided_slice %80 {offsets = [0, 0], sizes = [1, 128], strides = [1, 1]} : vector<1x384xf32> to vector<1x128xf32>
    %82 = vector.extract_strided_slice %80 {offsets = [0, 128], sizes = [1, 128], strides = [1, 1]} : vector<1x384xf32> to vector<1x128xf32>
    %83 = vector.extract_strided_slice %80 {offsets = [0, 256], sizes = [1, 128], strides = [1, 1]} : vector<1x384xf32> to vector<1x128xf32>
    %84 = vector.extract_strided_slice %75 {offsets = [0, 384], sizes = [1, 128], strides = [1, 1]} : vector<1x512xf32> to vector<1x128xf32>
    %85 = arith.mulf %82, %67 : vector<1x128xf32>
    %86 = arith.mulf %81, %84 : vector<1x128xf32>
    %87 = arith.addf %85, %86 : vector<1x128xf32>
    %88 = math.tanh %87 : vector<1x128xf32>
    %89 = arith.mulf %83, %88 : vector<1x128xf32>
    %90 = vector.extract_strided_slice %7 {offsets = [4, 0], sizes = [1, 512], strides = [1, 1]} : vector<8x512xf32> to vector<1x512xf32>
    %91 = vector.extract_strided_slice %89 {offsets = [0, 0], sizes = [1, 32], strides = [1, 1]} : vector<1x128xf32> to vector<1x32xf32>
    %c0_24 = arith.constant 0 : index
    %c0_25 = arith.constant 0 : index
    %92 = vector.load %arg1[%c0_24, %c0_25] : memref<40x512xf32, #tpu.memory_space<vmem>>, vector<32x512xf32>
    %cst_26 = arith.constant dense<0.000000e+00> : vector<1x512xf32>
    %93 = tpu.matmul %91, %92, %cst_26 {dimension_numbers = #tpu.dot_dimension_numbers<[1], [0], [0], [1], [0, 0, 1, 1], [], []>} : vector<1x32xf32>, vector<32x512xf32>, vector<1x512xf32> -> vector<1x512xf32>
    %94 = arith.addf %90, %93 : vector<1x512xf32>
    %95 = math.tanh %94 : vector<1x512xf32>
    %96 = vector.extract_strided_slice %95 {offsets = [0, 0], sizes = [1, 384], strides = [1, 1]} : vector<1x512xf32> to vector<1x384xf32>
    %cst_27 = arith.constant 5.000000e-01 : f32
    %97 = vector.broadcast %cst_27 : f32 to vector<1x384xf32>
    %98 = arith.mulf %97, %96 : vector<1x384xf32>
    %cst_28 = arith.constant 5.000000e-01 : f32
    %99 = vector.broadcast %cst_28 : f32 to vector<1x384xf32>
    %100 = arith.addf %98, %99 : vector<1x384xf32>
    %101 = vector.extract_strided_slice %100 {offsets = [0, 0], sizes = [1, 128], strides = [1, 1]} : vector<1x384xf32> to vector<1x128xf32>
    %102 = vector.extract_strided_slice %100 {offsets = [0, 128], sizes = [1, 128], strides = [1, 1]} : vector<1x384xf32> to vector<1x128xf32>
    %103 = vector.extract_strided_slice %100 {offsets = [0, 256], sizes = [1, 128], strides = [1, 1]} : vector<1x384xf32> to vector<1x128xf32>
    %104 = vector.extract_strided_slice %95 {offsets = [0, 384], sizes = [1, 128], strides = [1, 1]} : vector<1x512xf32> to vector<1x128xf32>
    %105 = arith.mulf %102, %87 : vector<1x128xf32>
    %106 = arith.mulf %101, %104 : vector<1x128xf32>
    %107 = arith.addf %105, %106 : vector<1x128xf32>
    %108 = math.tanh %107 : vector<1x128xf32>
    %109 = arith.mulf %103, %108 : vector<1x128xf32>
    %110 = vector.extract_strided_slice %7 {offsets = [5, 0], sizes = [1, 512], strides = [1, 1]} : vector<8x512xf32> to vector<1x512xf32>
    %111 = vector.extract_strided_slice %109 {offsets = [0, 0], sizes = [1, 32], strides = [1, 1]} : vector<1x128xf32> to vector<1x32xf32>
    %c0_29 = arith.constant 0 : index
    %c0_30 = arith.constant 0 : index
    %112 = vector.load %arg1[%c0_29, %c0_30] : memref<40x512xf32, #tpu.memory_space<vmem>>, vector<32x512xf32>
    %cst_31 = arith.constant dense<0.000000e+00> : vector<1x512xf32>
    %113 = tpu.matmul %111, %112, %cst_31 {dimension_numbers = #tpu.dot_dimension_numbers<[1], [0], [0], [1], [0, 0, 1, 1], [], []>} : vector<1x32xf32>, vector<32x512xf32>, vector<1x512xf32> -> vector<1x512xf32>
    %114 = arith.addf %110, %113 : vector<1x512xf32>
    %115 = math.tanh %114 : vector<1x512xf32>
    %116 = vector.extract_strided_slice %115 {offsets = [0, 0], sizes = [1, 384], strides = [1, 1]} : vector<1x512xf32> to vector<1x384xf32>
    %cst_32 = arith.constant 5.000000e-01 : f32
    %117 = vector.broadcast %cst_32 : f32 to vector<1x384xf32>
    %118 = arith.mulf %117, %116 : vector<1x384xf32>
    %cst_33 = arith.constant 5.000000e-01 : f32
    %119 = vector.broadcast %cst_33 : f32 to vector<1x384xf32>
    %120 = arith.addf %118, %119 : vector<1x384xf32>
    %121 = vector.extract_strided_slice %120 {offsets = [0, 0], sizes = [1, 128], strides = [1, 1]} : vector<1x384xf32> to vector<1x128xf32>
    %122 = vector.extract_strided_slice %120 {offsets = [0, 128], sizes = [1, 128], strides = [1, 1]} : vector<1x384xf32> to vector<1x128xf32>
    %123 = vector.extract_strided_slice %120 {offsets = [0, 256], sizes = [1, 128], strides = [1, 1]} : vector<1x384xf32> to vector<1x128xf32>
    %124 = vector.extract_strided_slice %115 {offsets = [0, 384], sizes = [1, 128], strides = [1, 1]} : vector<1x512xf32> to vector<1x128xf32>
    %125 = arith.mulf %122, %107 : vector<1x128xf32>
    %126 = arith.mulf %121, %124 : vector<1x128xf32>
    %127 = arith.addf %125, %126 : vector<1x128xf32>
    %128 = math.tanh %127 : vector<1x128xf32>
    %129 = arith.mulf %123, %128 : vector<1x128xf32>
    %130 = vector.extract_strided_slice %7 {offsets = [6, 0], sizes = [1, 512], strides = [1, 1]} : vector<8x512xf32> to vector<1x512xf32>
    %131 = vector.extract_strided_slice %129 {offsets = [0, 0], sizes = [1, 32], strides = [1, 1]} : vector<1x128xf32> to vector<1x32xf32>
    %c0_34 = arith.constant 0 : index
    %c0_35 = arith.constant 0 : index
    %132 = vector.load %arg1[%c0_34, %c0_35] : memref<40x512xf32, #tpu.memory_space<vmem>>, vector<32x512xf32>
    %cst_36 = arith.constant dense<0.000000e+00> : vector<1x512xf32>
    %133 = tpu.matmul %131, %132, %cst_36 {dimension_numbers = #tpu.dot_dimension_numbers<[1], [0], [0], [1], [0, 0, 1, 1], [], []>} : vector<1x32xf32>, vector<32x512xf32>, vector<1x512xf32> -> vector<1x512xf32>
    %134 = arith.addf %130, %133 : vector<1x512xf32>
    %135 = math.tanh %134 : vector<1x512xf32>
    %136 = vector.extract_strided_slice %135 {offsets = [0, 0], sizes = [1, 384], strides = [1, 1]} : vector<1x512xf32> to vector<1x384xf32>
    %cst_37 = arith.constant 5.000000e-01 : f32
    %137 = vector.broadcast %cst_37 : f32 to vector<1x384xf32>
    %138 = arith.mulf %137, %136 : vector<1x384xf32>
    %cst_38 = arith.constant 5.000000e-01 : f32
    %139 = vector.broadcast %cst_38 : f32 to vector<1x384xf32>
    %140 = arith.addf %138, %139 : vector<1x384xf32>
    %141 = vector.extract_strided_slice %140 {offsets = [0, 0], sizes = [1, 128], strides = [1, 1]} : vector<1x384xf32> to vector<1x128xf32>
    %142 = vector.extract_strided_slice %140 {offsets = [0, 128], sizes = [1, 128], strides = [1, 1]} : vector<1x384xf32> to vector<1x128xf32>
    %143 = vector.extract_strided_slice %140 {offsets = [0, 256], sizes = [1, 128], strides = [1, 1]} : vector<1x384xf32> to vector<1x128xf32>
    %144 = vector.extract_strided_slice %135 {offsets = [0, 384], sizes = [1, 128], strides = [1, 1]} : vector<1x512xf32> to vector<1x128xf32>
    %145 = arith.mulf %142, %127 : vector<1x128xf32>
    %146 = arith.mulf %141, %144 : vector<1x128xf32>
    %147 = arith.addf %145, %146 : vector<1x128xf32>
    %148 = math.tanh %147 : vector<1x128xf32>
    %149 = arith.mulf %143, %148 : vector<1x128xf32>
    %150 = vector.extract_strided_slice %7 {offsets = [7, 0], sizes = [1, 512], strides = [1, 1]} : vector<8x512xf32> to vector<1x512xf32>
    %151 = vector.extract_strided_slice %149 {offsets = [0, 0], sizes = [1, 32], strides = [1, 1]} : vector<1x128xf32> to vector<1x32xf32>
    %c0_39 = arith.constant 0 : index
    %c0_40 = arith.constant 0 : index
    %152 = vector.load %arg1[%c0_39, %c0_40] : memref<40x512xf32, #tpu.memory_space<vmem>>, vector<32x512xf32>
    %cst_41 = arith.constant dense<0.000000e+00> : vector<1x512xf32>
    %153 = tpu.matmul %151, %152, %cst_41 {dimension_numbers = #tpu.dot_dimension_numbers<[1], [0], [0], [1], [0, 0, 1, 1], [], []>} : vector<1x32xf32>, vector<32x512xf32>, vector<1x512xf32> -> vector<1x512xf32>
    %154 = arith.addf %150, %153 : vector<1x512xf32>
    %155 = math.tanh %154 : vector<1x512xf32>
    %156 = vector.extract_strided_slice %155 {offsets = [0, 0], sizes = [1, 384], strides = [1, 1]} : vector<1x512xf32> to vector<1x384xf32>
    %cst_42 = arith.constant 5.000000e-01 : f32
    %157 = vector.broadcast %cst_42 : f32 to vector<1x384xf32>
    %158 = arith.mulf %157, %156 : vector<1x384xf32>
    %cst_43 = arith.constant 5.000000e-01 : f32
    %159 = vector.broadcast %cst_43 : f32 to vector<1x384xf32>
    %160 = arith.addf %158, %159 : vector<1x384xf32>
    %161 = vector.extract_strided_slice %160 {offsets = [0, 0], sizes = [1, 128], strides = [1, 1]} : vector<1x384xf32> to vector<1x128xf32>
    %162 = vector.extract_strided_slice %160 {offsets = [0, 128], sizes = [1, 128], strides = [1, 1]} : vector<1x384xf32> to vector<1x128xf32>
    %163 = vector.extract_strided_slice %160 {offsets = [0, 256], sizes = [1, 128], strides = [1, 1]} : vector<1x384xf32> to vector<1x128xf32>
    %164 = vector.extract_strided_slice %155 {offsets = [0, 384], sizes = [1, 128], strides = [1, 1]} : vector<1x512xf32> to vector<1x128xf32>
    %165 = arith.mulf %162, %147 : vector<1x128xf32>
    %166 = arith.mulf %161, %164 : vector<1x128xf32>
    %167 = arith.addf %165, %166 : vector<1x128xf32>
    %168 = math.tanh %167 : vector<1x128xf32>
    %169 = arith.mulf %163, %168 : vector<1x128xf32>
    %c34 = arith.constant 34 : index
    %c0_44 = arith.constant 0 : index
    %170 = vector.load %arg1[%c34, %c0_44] : memref<40x512xf32, #tpu.memory_space<vmem>>, vector<1x128xf32>
    %171 = arith.mulf %169, %170 : vector<1x128xf32>
    %cst_45 = arith.constant dense<0.000000e+00> : vector<1xf32>
    %172 = vector.multi_reduction <add>, %171, %cst_45 [1] : vector<1x128xf32> to vector<1xf32>
    %173 = vector.shape_cast %172 : vector<1xf32> to vector<1x1xf32>
    %174 = vector.shape_cast %173 : vector<1x1xf32> to vector<1x1xf32>
    %175 = vector.broadcast %174 : vector<1x1xf32> to vector<1x128xf32>
    %c35 = arith.constant 35 : index
    %c0_46 = arith.constant 0 : index
    %176 = vector.load %arg1[%c35, %c0_46] : memref<40x512xf32, #tpu.memory_space<vmem>>, vector<1x128xf32>
    %177 = arith.addf %175, %176 : vector<1x128xf32>
    %c0_47 = arith.constant 0 : index
    %c0_48 = arith.constant 0 : index
    %178 = vector.load %arg2[%c0_47, %c0_48] : memref<1x128xf32, #tpu.memory_space<vmem>>, vector<1x128xf32>
    tpu.vector_store %arg2[%c0_47, %c0_48], %177 {strides = array<i32>} : memref<1x128xf32, #tpu.memory_space<vmem>>, vector<1x128xf32>,
    return
  }
}

</mosaic_0001>

<llo_original>
// kernel: lstm_forward.1
$region0: #{lstm_forward.1}
  #allocation0 [shape = 'u32[]', space=smem, size = 0x4, offset = 0x4, fixed_abs, tag = 'smem constant byte address 0x4 - core index']
  #allocation1 [shape = 'u32[144,128]{1,0:T(1,128)}', space=vmem, size = 0x12000, scoped, tag = 'internal scratch']
  %s0 = inlined_call_operand.vmem [shape: f32[8,1], index: 0, kind: input, shape index: {}]
  %s1 = inlined_call_operand.hbm [shape: f32[40,512], index: 1, kind: input, shape index: {}]
  %s2 = inlined_call_operand.hbm [shape: f32[1,128], index: 2, kind: output, shape index: {}]
  %s3 = sld [smem:[#allocation0]]
  $region22: #{lstm_forward.1} parent=0
    _
  %s5 = ssub.s32 1, %s3
  %s6 = scalar_select 0, %s5, %s3
  $region1: #{lstm_forward.1} parent=0
    #allocation2 [shape = 'u8[81920]{0}', space=vmem, size = 0x14000, scoped, tag = 'input window, operand 1, single buffered']
    #allocation3 [shape = 's32[1]{0}', space=sflag, size = 0x4, scoped, tag = 'scoped memory for lstm_forward.1']
    #allocation4 [shape = 's32[1]{0}', space=sflag, size = 0x4, scoped, tag = 'scoped memory for lstm_forward.1']
    #allocation5 [shape = 'u8[512]{0}', space=vmem, size = 0x400, scoped, tag = 'output window, operand 0, single buffered']
    %7 = vsyncpa [#allocation3], 0
    %8 = vsyncpa [#allocation4], 0
    // Predicated region
    $region2: #{lstm_forward.1} parent=1 // pred_check
      _
    $region3: #{lstm_forward.1} parent=1 // pred_check_branch
      %10 = sbr.rel (0) target = $region5
    $region4: #{lstm_forward.1} parent=1 // pred_region
      _
    $region5: #{lstm_forward.1} parent=1 // pred_fallthru
      _
    // Predicated region
    $region6: #{lstm_forward.1} parent=1 // pred_check
      _
    $region7: #{lstm_forward.1} parent=1 // pred_check_branch
      %12 = sbr.rel (0) target = $region9
    $region8: #{lstm_forward.1} parent=1 // pred_region
      %s14 = ssub.s32 2560, 2560
      %15 = vsyncadd [#allocation3], %s14
      %s16 = sshll.u32 [#allocation2], 4
      %s17 = int_to_ptr.vmem [resolvable:$true] %s16
      %22 = dma.hbm_to_vmem [thread:$0]  %s1, 2560, %s17, [#allocation3], 512, 512, 32
    $region9: #{lstm_forward.1} parent=1 // pred_fallthru
      _
    // Predicated region
    $region10: #{lstm_forward.1} parent=1 // pred_check
      _
    $region11: #{lstm_forward.1} parent=1 // pred_check_branch
      %24 = sbr.rel (0) target = $region13
    $region12: #{lstm_forward.1} parent=1 // pred_region
      %25 = dma.done [#allocation3], 2560
    $region13: #{lstm_forward.1} parent=1 // pred_fallthru
      _
    %s26 = scalar_lea.vmem [#allocation2], 129
    %v27 = vld [vmem:[%s26] ss:$8 sm:$0xf]
    %v28 = vld [vmem:[%s0] sm:$0xff]
    %s29 = scalar_lea.vmem [#allocation2], 128
    %v30 = vld [vmem:[%s29] ss:$8 sm:$0xf]
    %32 = vset.pattern.permute.xlu0 0
    %33 = vperm.xlu0 %32, %v28
    %v34 = vpop.permute.xlu0 %33
    %v37 = vlaneseq
    %v38 = vshrl.u32 %v37, 7
    %v39 = vsub.s32 0, %v38
    %v40 = vrot.slane %v30, %v39
    %v41 = vlaneseq
    %v42 = vshrl.u32 %v41, 7
    %v43 = vsub.s32 1, %v42
    %v44 = vrot.slane %v30, %v43
    %v45 = vlaneseq
    %v46 = vshrl.u32 %v45, 7
    %v47 = vsub.s32 2, %v46
    %v48 = vrot.slane %v30, %v47
    %v49 = vlaneseq
    %v50 = vshrl.u32 %v49, 7
    %v51 = vsub.s32 3, %v50
    %v52 = vrot.slane %v30, %v51
    %v57 = vmul.f32 %v34, %v40
    %v58 = vmul.f32 %v34, %v44
    %v59 = vmul.f32 %v34, %v48
    %v60 = vmul.f32 %v34, %v52
    %v62 = vlaneseq
    %v63 = vshrl.u32 %v62, 7
    %v64 = vsub.s32 0, %v63
    %v65 = vrot.slane %v27, %v64
    %v66 = vlaneseq
    %v67 = vshrl.u32 %v66, 7
    %v68 = vsub.s32 1, %v67
    %v69 = vrot.slane %v27, %v68
    %v70 = vlaneseq
    %v71 = vshrl.u32 %v70, 7
    %v72 = vsub.s32 2, %v71
    %v73 = vrot.slane %v27, %v72
    %v74 = vlaneseq
    %v75 = vshrl.u32 %v74, 7
    %v76 = vsub.s32 3, %v75
    %v77 = vrot.slane %v27, %v76
    %v82 = vadd.f32 %v57, %v65
    %v83 = vadd.f32 %v58, %v69
    %v84 = vadd.f32 %v59, %v73
    %v85 = vadd.f32 %v60, %v77
    %v86 = vld [vmem:[#allocation2] sm:$0xff]
    %v87 = vld [vmem:[#allocation2 + $0x8] sm:$0xff]
    %v88 = vld [vmem:[#allocation2 + $0x10] sm:$0xff]
    %v89 = vld [vmem:[#allocation2 + $0x18] sm:$0xff]
    %v90 = vld [vmem:[#allocation2 + $0x20] sm:$0xff]
    %v91 = vld [vmem:[#allocation2 + $0x28] sm:$0xff]
    %v92 = vld [vmem:[#allocation2 + $0x30] sm:$0xff]
    %v93 = vld [vmem:[#allocation2 + $0x38] sm:$0xff]
    %v94 = vld [vmem:[#allocation2 + $0x40] sm:$0xff]
    %v95 = vld [vmem:[#allocation2 + $0x48] sm:$0xff]
    %v96 = vld [vmem:[#allocation2 + $0x50] sm:$0xff]
    %v97 = vld [vmem:[#allocation2 + $0x58] sm:$0xff]
    %v98 = vld [vmem:[#allocation2 + $0x60] sm:$0xff]
    %v99 = vld [vmem:[#allocation2 + $0x68] sm:$0xff]
    %v100 = vld [vmem:[#allocation2 + $0x70] sm:$0xff]
    %v101 = vld [vmem:[#allocation2 + $0x78] sm:$0xff]
    %vm102 = vcmask 261120
    %v104 = vsel %vm102, 0.0, 0
    %106 = vmatprep.subr.mxu0 %v87
    %107 = vmatpush1.msra.mxu0 %v86
    %108 = vmatprep.subr.mxu0 %v91
    %109 = vmatpush1.msra.mxu0 %v90
    %110 = vmatprep.subr.mxu0 %v95
    %111 = vmatpush1.msra.mxu0 %v94
    %112 = vmatprep.subr.mxu0 %v99
    %113 = vmatpush1.msra.mxu0 %v98
    %114 = vmatprep.subr.mxu0 0.0
    %115 = vmatpush1.msra.mxu0 0.0
    %116 = vmatprep.subr.mxu0 0.0
    %117 = vmatpush1.msra.mxu0 0.0
    %118 = vmatprep.subr.mxu0 0.0
    %119 = vmatpush1.msra.mxu0 0.0
    %120 = vmatprep.subr.mxu0 0.0
    %121 = vmatpush1.msra.mxu0 0.0
    %122 = vmatprep.subr.mxu0 0.0
    %123 = vmatpush1.msra.mxu0 0.0
    %124 = vmatprep.subr.mxu0 0.0
    %125 = vmatpush1.msra.mxu0 0.0
    %126 = vmatprep.subr.mxu0 0.0
    %127 = vmatpush1.msra.mxu0 0.0
    %128 = vmatprep.subr.mxu0 0.0
    %129 = vmatpush1.msra.mxu0 0.0
    %130 = vmatprep.subr.mxu0 0.0
    %131 = vmatpush1.msra.mxu0 0.0
    %132 = vmatprep.subr.mxu0 0.0
    %133 = vmatpush1.msra.mxu0 0.0
    %134 = vmatprep.subr.mxu0 0.0
    %135 = vmatpush1.msra.mxu0 0.0
    %136 = vmatprep.subr.mxu0 0.0
    %137 = vmatpush1.msra.mxu0 0.0
    %138 = vmatprep.subr.mxu0 0.0
    %139 = vmatpush1.msra.mxu0 0.0
    %140 = vmatprep.subr.mxu0 0.0
    %141 = vmatpush1.msra.mxu0 0.0
    %142 = vmatprep.subr.mxu0 0.0
    %143 = vmatpush1.msra.mxu0 0.0
    %144 = vmatprep.subr.mxu0 0.0
    %145 = vmatpush1.msra.mxu0 0.0
    %146 = vmatprep.subr.mxu0 0.0
    %147 = vmatpush1.msra.mxu0 0.0
    %148 = vmatprep.subr.mxu0 0.0
    %149 = vmatpush1.msra.mxu0 0.0
    %150 = vmatprep.subr.mxu0 0.0
    %151 = vmatpush1.msra.mxu0 0.0
    %152 = vmatprep.subr.mxu0 0.0
    %153 = vmatpush1.msra.mxu0 0.0
    %154 = vmatprep.subr.mxu0 0.0
    %155 = vmatpush1.msra.mxu0 0.0
    %156 = vmatprep.subr.mxu0 0.0
    %157 = vmatpush1.msra.mxu0 0.0
    %158 = vmatprep.subr.mxu0 0.0
    %159 = vmatpush1.msra.mxu0 0.0
    %160 = vmatprep.subr.mxu0 0.0
    %161 = vmatpush1.msra.mxu0 0.0
    %162 = vmatprep.subr.mxu0 0.0
    %163 = vmatpush1.msra.mxu0 0.0
    %164 = vmatprep.subr.mxu0 0.0
    %165 = vmatpush1.msra.mxu0 0.0
    %166 = vmatprep.subr.mxu0 0.0
    %167 = vmatpush1.msra.mxu0 0.0
    %168 = vmatprep.subr.mxu0 0.0
    %169 = vmatpush1.msra.mxu0 0.0
    %170 = vmatprep.mubr.f32.mxu0 0.0
    %171 = vmatmul.mubr.f32.gmra.mrb[0].mxu0 %v104
    %v172 = vpop.f32.mrb[0].mxu0
    %v173 = vadd.f32 0.0, %v172
    %v174 = vpop.f32.mrb[0].mxu0
    %v175 = vadd.f32 0.0, %v174
    %176 = vdwg.mxu0
    %177 = vmatprep.subr.mxu0 %v89
    %178 = vmatpush1.msra.mxu0 %v88
    %179 = vmatprep.subr.mxu0 %v93
    %180 = vmatpush1.msra.mxu0 %v92
    %181 = vmatprep.subr.mxu0 %v97
    %182 = vmatpush1.msra.mxu0 %v96
    %183 = vmatprep.subr.mxu0 %v101
    %184 = vmatpush1.msra.mxu0 %v100
    %185 = vmatprep.subr.mxu0 0.0
    %186 = vmatpush1.msra.mxu0 0.0
    %187 = vmatprep.subr.mxu0 0.0
    %188 = vmatpush1.msra.mxu0 0.0
    %189 = vmatprep.subr.mxu0 0.0
    %190 = vmatpush1.msra.mxu0 0.0
    %191 = vmatprep.subr.mxu0 0.0
    %192 = vmatpush1.msra.mxu0 0.0
    %193 = vmatprep.subr.mxu0 0.0
    %194 = vmatpush1.msra.mxu0 0.0
    %195 = vmatprep.subr.mxu0 0.0
    %196 = vmatpush1.msra.mxu0 0.0
    %197 = vmatprep.subr.mxu0 0.0
    %198 = vmatpush1.msra.mxu0 0.0
    %199 = vmatprep.subr.mxu0 0.0
    %200 = vmatpush1.msra.mxu0 0.0
    %201 = vmatprep.subr.mxu0 0.0
    %202 = vmatpush1.msra.mxu0 0.0
    %203 = vmatprep.subr.mxu0 0.0
    %204 = vmatpush1.msra.mxu0 0.0
    %205 = vmatprep.subr.mxu0 0.0
    %206 = vmatpush1.msra.mxu0 0.0
    %207 = vmatprep.subr.mxu0 0.0
    %208 = vmatpush1.msra.mxu0 0.0
    %209 = vmatprep.subr.mxu0 0.0
    %210 = vmatpush1.msra.mxu0 0.0
    %211 = vmatprep.subr.mxu0 0.0
    %212 = vmatpush1.msra.mxu0 0.0
    %213 = vmatprep.subr.mxu0 0.0
    %214 = vmatpush1.msra.mxu0 0.0
    %215 = vmatprep.subr.mxu0 0.0
    %216 = vmatpush1.msra.mxu0 0.0
    %217 = vmatprep.subr.mxu0 0.0
    %218 = vmatpush1.msra.mxu0 0.0
    %219 = vmatprep.subr.mxu0 0.0
    %220 = vmatpush1.msra.mxu0 0.0
    %221 = vmatprep.subr.mxu0 0.0
    %222 = vmatpush1.msra.mxu0 0.0
    %223 = vmatprep.subr.mxu0 0.0
    %224 = vmatpush1.msra.mxu0 0.0
    %225 = vmatprep.subr.mxu0 0.0
    %226 = vmatpush1.msra.mxu0 0.0
    %227 = vmatprep.subr.mxu0 0.0
    %228 = vmatpush1.msra.mxu0 0.0
    %229 = vmatprep.subr.mxu0 0.0
    %230 = vmatpush1.msra.mxu0 0.0
    %231 = vmatprep.subr.mxu0 0.0
    %232 = vmatpush1.msra.mxu0 0.0
    %233 = vmatprep.subr.mxu0 0.0
    %234 = vmatpush1.msra.mxu0 0.0
    %235 = vmatprep.subr.mxu0 0.0
    %236 = vmatpush1.msra.mxu0 0.0
    %237 = vmatprep.subr.mxu0 0.0
    %238 = vmatpush1.msra.mxu0 0.0
    %239 = vmatprep.subr.mxu0 0.0
    %240 = vmatpush1.msra.mxu0 0.0
    %241 = vmatprep.mubr.f32.mxu0 0.0
    %242 = vmatmul.mubr.f32.gmra.mrb[0].mxu0 %v104
    %v243 = vpop.f32.mrb[0].mxu0
    %v244 = vadd.f32 0.0, %v243
    %v245 = vpop.f32.mrb[0].mxu0
    %v246 = vadd.f32 0.0, %v245
    %247 = vdwg.mxu0
    %v248 = vadd.f32 %v82, %v173
    %v249 = vadd.f32 %v83, %v175
    %v250 = vadd.f32 %v84, %v244
    %v251 = vadd.f32 %v85, %v246
    %v252 = vtanh.pop %v248
    %v253 = vtanh.pop %v249
    %v254 = vtanh.pop %v250
    %v255 = vtanh.pop %v251
    %v256 = vmul.f32 %v252, 0.5
    %v257 = vmul.f32 %v253, 0.5
    %v258 = vmul.f32 %v254, 0.5
    %v259 = vadd.f32 %v256, 0.5
    %v260 = vadd.f32 %v257, 0.5
    %v261 = vadd.f32 %v258, 0.5
    %v262 = vmul.f32 %v260, 0.0
    %v263 = vmul.f32 %v259, %v255
    %v264 = vadd.f32 %v262, %v263
    %v265 = vtanh.pop %v264
    %v266 = vmul.f32 %v261, %v265
    %v268 = vsel %vm102, %v266, 0
    %270 = vmatprep.subr.mxu0 %v87
    %271 = vmatpush1.msra.mxu0 %v86
    %272 = vmatprep.subr.mxu0 %v91
    %273 = vmatpush1.msra.mxu0 %v90
    %274 = vmatprep.subr.mxu0 %v95
    %275 = vmatpush1.msra.mxu0 %v94
    %276 = vmatprep.subr.mxu0 %v99
    %277 = vmatpush1.msra.mxu0 %v98
    %278 = vmatprep.subr.mxu0 0.0
    %279 = vmatpush1.msra.mxu0 0.0
    %280 = vmatprep.subr.mxu0 0.0
    %281 = vmatpush1.msra.mxu0 0.0
    %282 = vmatprep.subr.mxu0 0.0
    %283 = vmatpush1.msra.mxu0 0.0
    %284 = vmatprep.subr.mxu0 0.0
    %285 = vmatpush1.msra.mxu0 0.0
    %286 = vmatprep.subr.mxu0 0.0
    %287 = vmatpush1.msra.mxu0 0.0
    %288 = vmatprep.subr.mxu0 0.0
    %289 = vmatpush1.msra.mxu0 0.0
    %290 = vmatprep.subr.mxu0 0.0
    %291 = vmatpush1.msra.mxu0 0.0
    %292 = vmatprep.subr.mxu0 0.0
    %293 = vmatpush1.msra.mxu0 0.0
    %294 = vmatprep.subr.mxu0 0.0
    %295 = vmatpush1.msra.mxu0 0.0
    %296 = vmatprep.subr.mxu0 0.0
    %297 = vmatpush1.msra.mxu0 0.0
    %298 = vmatprep.subr.mxu0 0.0
    %299 = vmatpush1.msra.mxu0 0.0
    %300 = vmatprep.subr.mxu0 0.0
    %301 = vmatpush1.msra.mxu0 0.0
    %302 = vmatprep.subr.mxu0 0.0
    %303 = vmatpush1.msra.mxu0 0.0
    %304 = vmatprep.subr.mxu0 0.0
    %305 = vmatpush1.msra.mxu0 0.0
    %306 = vmatprep.subr.mxu0 0.0
    %307 = vmatpush1.msra.mxu0 0.0
    %308 = vmatprep.subr.mxu0 0.0
    %309 = vmatpush1.msra.mxu0 0.0
    %310 = vmatprep.subr.mxu0 0.0
    %311 = vmatpush1.msra.mxu0 0.0
    %312 = vmatprep.subr.mxu0 0.0
    %313 = vmatpush1.msra.mxu0 0.0
    %314 = vmatprep.subr.mxu0 0.0
    %315 = vmatpush1.msra.mxu0 0.0
    %316 = vmatprep.subr.mxu0 0.0
    %317 = vmatpush1.msra.mxu0 0.0
    %318 = vmatprep.subr.mxu0 0.0
    %319 = vmatpush1.msra.mxu0 0.0
    %320 = vmatprep.subr.mxu0 0.0
    %321 = vmatpush1.msra.mxu0 0.0
    %322 = vmatprep.subr.mxu0 0.0
    %323 = vmatpush1.msra.mxu0 0.0
    %324 = vmatprep.subr.mxu0 0.0
    %325 = vmatpush1.msra.mxu0 0.0
    %326 = vmatprep.subr.mxu0 0.0
    %327 = vmatpush1.msra.mxu0 0.0
    %328 = vmatprep.subr.mxu0 0.0
    %329 = vmatpush1.msra.mxu0 0.0
    %330 = vmatprep.subr.mxu0 0.0
    %331 = vmatpush1.msra.mxu0 0.0
    %332 = vmatprep.subr.mxu0 0.0
    %333 = vmatpush1.msra.mxu0 0.0
    %334 = vmatprep.mubr.f32.mxu0 0.0
    %335 = vmatmul.mubr.f32.gmra.mrb[0].mxu0 %v268
    %v336 = vpop.f32.mrb[0].mxu0
    %v337 = vadd.f32 0.0, %v336
    %v338 = vpop.f32.mrb[0].mxu0
    %v339 = vadd.f32 0.0, %v338
    %340 = vdwg.mxu0
    %341 = vmatprep.subr.mxu0 %v89
    %342 = vmatpush1.msra.mxu0 %v88
    %343 = vmatprep.subr.mxu0 %v93
    %344 = vmatpush1.msra.mxu0 %v92
    %345 = vmatprep.subr.mxu0 %v97
    %346 = vmatpush1.msra.mxu0 %v96
    %347 = vmatprep.subr.mxu0 %v101
    %348 = vmatpush1.msra.mxu0 %v100
    %349 = vmatprep.subr.mxu0 0.0
    %350 = vmatpush1.msra.mxu0 0.0
    %351 = vmatprep.subr.mxu0 0.0
    %352 = vmatpush1.msra.mxu0 0.0
    %353 = vmatprep.subr.mxu0 0.0
    %354 = vmatpush1.msra.mxu0 0.0
    %355 = vmatprep.subr.mxu0 0.0
    %356 = vmatpush1.msra.mxu0 0.0
    %357 = vmatprep.subr.mxu0 0.0
    %358 = vmatpush1.msra.mxu0 0.0
    %359 = vmatprep.subr.mxu0 0.0
    %360 = vmatpush1.msra.mxu0 0.0
    %361 = vmatprep.subr.mxu0 0.0
    %362 = vmatpush1.msra.mxu0 0.0
    %363 = vmatprep.subr.mxu0 0.0
    %364 = vmatpush1.msra.mxu0 0.0
    %365 = vmatprep.subr.mxu0 0.0
    %366 = vmatpush1.msra.mxu0 0.0
    %367 = vmatprep.subr.mxu0 0.0
    %368 = vmatpush1.msra.mxu0 0.0
    %369 = vmatprep.subr.mxu0 0.0
    %370 = vmatpush1.msra.mxu0 0.0
    %371 = vmatprep.subr.mxu0 0.0
    %372 = vmatpush1.msra.mxu0 0.0
    %373 = vmatprep.subr.mxu0 0.0
    %374 = vmatpush1.msra.mxu0 0.0
    %375 = vmatprep.subr.mxu0 0.0
    %376 = vmatpush1.msra.mxu0 0.0
    %377 = vmatprep.subr.mxu0 0.0
    %378 = vmatpush1.msra.mxu0 0.0
    %379 = vmatprep.subr.mxu0 0.0
    %380 = vmatpush1.msra.mxu0 0.0
    %381 = vmatprep.subr.mxu0 0.0
    %382 = vmatpush1.msra.mxu0 0.0
    %383 = vmatprep.subr.mxu0 0.0
    %384 = vmatpush1.msra.mxu0 0.0
    %385 = vmatprep.subr.mxu0 0.0
    %386 = vmatpush1.msra.mxu0 0.0
    %387 = vmatprep.subr.mxu0 0.0
    %388 = vmatpush1.msra.mxu0 0.0
    %389 = vmatprep.subr.mxu0 0.0
    %390 = vmatpush1.msra.mxu0 0.0
    %391 = vmatprep.subr.mxu0 0.0
    %392 = vmatpush1.msra.mxu0 0.0
    %393 = vmatprep.subr.mxu0 0.0
    %394 = vmatpush1.msra.mxu0 0.0
    %395 = vmatprep.subr.mxu0 0.0
    %396 = vmatpush1.msra.mxu0 0.0
    %397 = vmatprep.subr.mxu0 0.0
    %398 = vmatpush1.msra.mxu0 0.0
    %399 = vmatprep.subr.mxu0 0.0
    %400 = vmatpush1.msra.mxu0 0.0
    %401 = vmatprep.subr.mxu0 0.0
    %402 = vmatpush1.msra.mxu0 0.0
    %403 = vmatprep.subr.mxu0 0.0
    %404 = vmatpush1.msra.mxu0 0.0
    %405 = vmatprep.mubr.f32.mxu0 0.0
    %406 = vmatmul.mubr.f32.gmra.mrb[0].mxu0 %v268
    %v407 = vpop.f32.mrb[0].mxu0
    %v408 = vadd.f32 0.0, %v407
    %v409 = vpop.f32.mrb[0].mxu0
    %v410 = vadd.f32 0.0, %v409
    %411 = vdwg.mxu0
    %v416 = vrot.slane %v337, 7
    %v417 = vrot.slane %v339, 7
    %v418 = vrot.slane %v408, 7
    %v419 = vrot.slane %v410, 7
    %v424 = vadd.f32 %v82, %v416
    %v425 = vadd.f32 %v83, %v417
    %v426 = vadd.f32 %v84, %v418
    %v427 = vadd.f32 %v85, %v419
    %v428 = vtanh.pop %v424
    %v429 = vtanh.pop %v425
    %v430 = vtanh.pop %v426
    %v431 = vtanh.pop %v427
    %v432 = vmul.f32 %v428, 0.5
    %v433 = vmul.f32 %v429, 0.5
    %v434 = vmul.f32 %v430, 0.5
    %v435 = vadd.f32 %v432, 0.5
    %v436 = vadd.f32 %v433, 0.5
    %v437 = vadd.f32 %v434, 0.5
    %v439 = vrot.slane %v264, 7
    %v441 = vmul.f32 %v436, %v439
    %v442 = vmul.f32 %v435, %v431
    %v443 = vadd.f32 %v441, %v442
    %v444 = vtanh.pop %v443
    %v445 = vmul.f32 %v437, %v444
    %v447 = vrot.slane %v445, 1
    %v448 = vsel %vm102, %v447, 0
    %450 = vmatprep.subr.mxu0 %v87
    %451 = vmatpush1.msra.mxu0 %v86
    %452 = vmatprep.subr.mxu0 %v91
    %453 = vmatpush1.msra.mxu0 %v90
    %454 = vmatprep.subr.mxu0 %v95
    %455 = vmatpush1.msra.mxu0 %v94
    %456 = vmatprep.subr.mxu0 %v99
    %457 = vmatpush1.msra.mxu0 %v98
    %458 = vmatprep.subr.mxu0 0.0
    %459 = vmatpush1.msra.mxu0 0.0
    %460 = vmatprep.subr.mxu0 0.0
    %461 = vmatpush1.msra.mxu0 0.0
    %462 = vmatprep.subr.mxu0 0.0
    %463 = vmatpush1.msra.mxu0 0.0
    %464 = vmatprep.subr.mxu0 0.0
    %465 = vmatpush1.msra.mxu0 0.0
    %466 = vmatprep.subr.mxu0 0.0
    %467 = vmatpush1.msra.mxu0 0.0
    %468 = vmatprep.subr.mxu0 0.0
    %469 = vmatpush1.msra.mxu0 0.0
    %470 = vmatprep.subr.mxu0 0.0
    %471 = vmatpush1.msra.mxu0 0.0
    %472 = vmatprep.subr.mxu0 0.0
    %473 = vmatpush1.msra.mxu0 0.0
    %474 = vmatprep.subr.mxu0 0.0
    %475 = vmatpush1.msra.mxu0 0.0
    %476 = vmatprep.subr.mxu0 0.0
    %477 = vmatpush1.msra.mxu0 0.0
    %478 = vmatprep.subr.mxu0 0.0
    %479 = vmatpush1.msra.mxu0 0.0
    %480 = vmatprep.subr.mxu0 0.0
    %481 = vmatpush1.msra.mxu0 0.0
    %482 = vmatprep.subr.mxu0 0.0
    %483 = vmatpush1.msra.mxu0 0.0
    %484 = vmatprep.subr.mxu0 0.0
    %485 = vmatpush1.msra.mxu0 0.0
    %486 = vmatprep.subr.mxu0 0.0
    %487 = vmatpush1.msra.mxu0 0.0
    %488 = vmatprep.subr.mxu0 0.0
    %489 = vmatpush1.msra.mxu0 0.0
    %490 = vmatprep.subr.mxu0 0.0
    %491 = vmatpush1.msra.mxu0 0.0
    %492 = vmatprep.subr.mxu0 0.0
    %493 = vmatpush1.msra.mxu0 0.0
    %494 = vmatprep.subr.mxu0 0.0
    %495 = vmatpush1.msra.mxu0 0.0
    %496 = vmatprep.subr.mxu0 0.0
    %497 = vmatpush1.msra.mxu0 0.0
    %498 = vmatprep.subr.mxu0 0.0
    %499 = vmatpush1.msra.mxu0 0.0
    %500 = vmatprep.subr.mxu0 0.0
    %501 = vmatpush1.msra.mxu0 0.0
    %502 = vmatprep.subr.mxu0 0.0
    %503 = vmatpush1.msra.mxu0 0.0
    %504 = vmatprep.subr.mxu0 0.0
    %505 = vmatpush1.msra.mxu0 0.0
    %506 = vmatprep.subr.mxu0 0.0
    %507 = vmatpush1.msra.mxu0 0.0
    %508 = vmatprep.subr.mxu0 0.0
    %509 = vmatpush1.msra.mxu0 0.0
    %510 = vmatprep.subr.mxu0 0.0
    %511 = vmatpush1.msra.mxu0 0.0
    %512 = vmatprep.subr.mxu0 0.0
    %513 = vmatpush1.msra.mxu0 0.0
    %514 = vmatprep.mubr.f32.mxu0 0.0
    %515 = vmatmul.mubr.f32.gmra.mrb[0].mxu0 %v448
    %v516 = vpop.f32.mrb[0].mxu0
    %v517 = vadd.f32 0.0, %v516
    %v518 = vpop.f32.mrb[0].mxu0
    %v519 = vadd.f32 0.0, %v518
    %520 = vdwg.mxu0
    %521 = vmatprep.subr.mxu0 %v89
    %522 = vmatpush1.msra.mxu0 %v88
    %523 = vmatprep.subr.mxu0 %v93
    %524 = vmatpush1.msra.mxu0 %v92
    %525 = vmatprep.subr.mxu0 %v97
    %526 = vmatpush1.msra.mxu0 %v96
    %527 = vmatprep.subr.mxu0 %v101
    %528 = vmatpush1.msra.mxu0 %v100
    %529 = vmatprep.subr.mxu0 0.0
    %530 = vmatpush1.msra.mxu0 0.0
    %531 = vmatprep.subr.mxu0 0.0
    %532 = vmatpush1.msra.mxu0 0.0
    %533 = vmatprep.subr.mxu0 0.0
    %534 = vmatpush1.msra.mxu0 0.0
    %535 = vmatprep.subr.mxu0 0.0
    %536 = vmatpush1.msra.mxu0 0.0
    %537 = vmatprep.subr.mxu0 0.0
    %538 = vmatpush1.msra.mxu0 0.0
    %539 = vmatprep.subr.mxu0 0.0
    %540 = vmatpush1.msra.mxu0 0.0
    %541 = vmatprep.subr.mxu0 0.0
    %542 = vmatpush1.msra.mxu0 0.0
    %543 = vmatprep.subr.mxu0 0.0
    %544 = vmatpush1.msra.mxu0 0.0
    %545 = vmatprep.subr.mxu0 0.0
    %546 = vmatpush1.msra.mxu0 0.0
    %547 = vmatprep.subr.mxu0 0.0
    %548 = vmatpush1.msra.mxu0 0.0
    %549 = vmatprep.subr.mxu0 0.0
    %550 = vmatpush1.msra.mxu0 0.0
    %551 = vmatprep.subr.mxu0 0.0
    %552 = vmatpush1.msra.mxu0 0.0
    %553 = vmatprep.subr.mxu0 0.0
    %554 = vmatpush1.msra.mxu0 0.0
    %555 = vmatprep.subr.mxu0 0.0
    %556 = vmatpush1.msra.mxu0 0.0
    %557 = vmatprep.subr.mxu0 0.0
    %558 = vmatpush1.msra.mxu0 0.0
    %559 = vmatprep.subr.mxu0 0.0
    %560 = vmatpush1.msra.mxu0 0.0
    %561 = vmatprep.subr.mxu0 0.0
    %562 = vmatpush1.msra.mxu0 0.0
    %563 = vmatprep.subr.mxu0 0.0
    %564 = vmatpush1.msra.mxu0 0.0
    %565 = vmatprep.subr.mxu0 0.0
    %566 = vmatpush1.msra.mxu0 0.0
    %567 = vmatprep.subr.mxu0 0.0
    %568 = vmatpush1.msra.mxu0 0.0
    %569 = vmatprep.subr.mxu0 0.0
    %570 = vmatpush1.msra.mxu0 0.0
    %571 = vmatprep.subr.mxu0 0.0
    %572 = vmatpush1.msra.mxu0 0.0
    %573 = vmatprep.subr.mxu0 0.0
    %574 = vmatpush1.msra.mxu0 0.0
    %575 = vmatprep.subr.mxu0 0.0
    %576 = vmatpush1.msra.mxu0 0.0
    %577 = vmatprep.subr.mxu0 0.0
    %578 = vmatpush1.msra.mxu0 0.0
    %579 = vmatprep.subr.mxu0 0.0
    %580 = vmatpush1.msra.mxu0 0.0
    %581 = vmatprep.subr.mxu0 0.0
    %582 = vmatpush1.msra.mxu0 0.0
    %583 = vmatprep.subr.mxu0 0.0
    %584 = vmatpush1.msra.mxu0 0.0
    %585 = vmatprep.mubr.f32.mxu0 0.0
    %586 = vmatmul.mubr.f32.gmra.mrb[0].mxu0 %v448
    %v587 = vpop.f32.mrb[0].mxu0
    %v588 = vadd.f32 0.0, %v587
    %v589 = vpop.f32.mrb[0].mxu0
    %v590 = vadd.f32 0.0, %v589
    %591 = vdwg.mxu0
    %v596 = vrot.slane %v517, 6
    %v597 = vrot.slane %v519, 6
    %v598 = vrot.slane %v588, 6
    %v599 = vrot.slane %v590, 6
    %v604 = vadd.f32 %v82, %v596
    %v605 = vadd.f32 %v83, %v597
    %v606 = vadd.f32 %v84, %v598
    %v607 = vadd.f32 %v85, %v599
    %v608 = vtanh.pop %v604
    %v609 = vtanh.pop %v605
    %v610 = vtanh.pop %v606
    %v611 = vtanh.pop %v607
    %v612 = vmul.f32 %v608, 0.5
    %v613 = vmul.f32 %v609, 0.5
    %v614 = vmul.f32 %v610, 0.5
    %v615 = vadd.f32 %v612, 0.5
    %v616 = vadd.f32 %v613, 0.5
    %v617 = vadd.f32 %v614, 0.5
    %v619 = vrot.slane %v443, 7
    %v621 = vmul.f32 %v616, %v619
    %v622 = vmul.f32 %v615, %v611
    %v623 = vadd.f32 %v621, %v622
    %v624 = vtanh.pop %v623
    %v625 = vmul.f32 %v617, %v624
    %v627 = vrot.slane %v625, 2
    %v628 = vsel %vm102, %v627, 0
    %630 = vmatprep.subr.mxu0 %v87
    %631 = vmatpush1.msra.mxu0 %v86
    %632 = vmatprep.subr.mxu0 %v91
    %633 = vmatpush1.msra.mxu0 %v90
    %634 = vmatprep.subr.mxu0 %v95
    %635 = vmatpush1.msra.mxu0 %v94
    %636 = vmatprep.subr.mxu0 %v99
    %637 = vmatpush1.msra.mxu0 %v98
    %638 = vmatprep.subr.mxu0 0.0
    %639 = vmatpush1.msra.mxu0 0.0
    %640 = vmatprep.subr.mxu0 0.0
    %641 = vmatpush1.msra.mxu0 0.0
    %642 = vmatprep.subr.mxu0 0.0
    %643 = vmatpush1.msra.mxu0 0.0
    %644 = vmatprep.subr.mxu0 0.0
    %645 = vmatpush1.msra.mxu0 0.0
    %646 = vmatprep.subr.mxu0 0.0
    %647 = vmatpush1.msra.mxu0 0.0
    %648 = vmatprep.subr.mxu0 0.0
    %649 = vmatpush1.msra.mxu0 0.0
    %650 = vmatprep.subr.mxu0 0.0
    %651 = vmatpush1.msra.mxu0 0.0
    %652 = vmatprep.subr.mxu0 0.0
    %653 = vmatpush1.msra.mxu0 0.0
    %654 = vmatprep.subr.mxu0 0.0
    %655 = vmatpush1.msra.mxu0 0.0
    %656 = vmatprep.subr.mxu0 0.0
    %657 = vmatpush1.msra.mxu0 0.0
    %658 = vmatprep.subr.mxu0 0.0
    %659 = vmatpush1.msra.mxu0 0.0
    %660 = vmatprep.subr.mxu0 0.0
    %661 = vmatpush1.msra.mxu0 0.0
    %662 = vmatprep.subr.mxu0 0.0
    %663 = vmatpush1.msra.mxu0 0.0
    %664 = vmatprep.subr.mxu0 0.0
    %665 = vmatpush1.msra.mxu0 0.0
    %666 = vmatprep.subr.mxu0 0.0
    %667 = vmatpush1.msra.mxu0 0.0
    %668 = vmatprep.subr.mxu0 0.0
    %669 = vmatpush1.msra.mxu0 0.0
    %670 = vmatprep.subr.mxu0 0.0
    %671 = vmatpush1.msra.mxu0 0.0
    %672 = vmatprep.subr.mxu0 0.0
    %673 = vmatpush1.msra.mxu0 0.0
    %674 = vmatprep.subr.mxu0 0.0
    %675 = vmatpush1.msra.mxu0 0.0
    %676 = vmatprep.subr.mxu0 0.0
    %677 = vmatpush1.msra.mxu0 0.0
    %678 = vmatprep.subr.mxu0 0.0
    %679 = vmatpush1.msra.mxu0 0.0
    %680 = vmatprep.subr.mxu0 0.0
    %681 = vmatpush1.msra.mxu0 0.0
    %682 = vmatprep.subr.mxu0 0.0
    %683 = vmatpush1.msra.mxu0 0.0
    %684 = vmatprep.subr.mxu0 0.0
    %685 = vmatpush1.msra.mxu0 0.0
    %686 = vmatprep.subr.mxu0 0.0
    %687 = vmatpush1.msra.mxu0 0.0
    %688 = vmatprep.subr.mxu0 0.0
    %689 = vmatpush1.msra.mxu0 0.0
    %690 = vmatprep.subr.mxu0 0.0
    %691 = vmatpush1.msra.mxu0 0.0
    %692 = vmatprep.subr.mxu0 0.0
    %693 = vmatpush1.msra.mxu0 0.0
    %694 = vmatprep.mubr.f32.mxu0 0.0
    %695 = vmatmul.mubr.f32.gmra.mrb[0].mxu0 %v628
    %v696 = vpop.f32.mrb[0].mxu0
    %v697 = vadd.f32 0.0, %v696
    %v698 = vpop.f32.mrb[0].mxu0
    %v699 = vadd.f32 0.0, %v698
    %700 = vdwg.mxu0
    %701 = vmatprep.subr.mxu0 %v89
    %702 = vmatpush1.msra.mxu0 %v88
    %703 = vmatprep.subr.mxu0 %v93
    %704 = vmatpush1.msra.mxu0 %v92
    %705 = vmatprep.subr.mxu0 %v97
    %706 = vmatpush1.msra.mxu0 %v96
    %707 = vmatprep.subr.mxu0 %v101
    %708 = vmatpush1.msra.mxu0 %v100
    %709 = vmatprep.subr.mxu0 0.0
    %710 = vmatpush1.msra.mxu0 0.0
    %711 = vmatprep.subr.mxu0 0.0
    %712 = vmatpush1.msra.mxu0 0.0
    %713 = vmatprep.subr.mxu0 0.0
    %714 = vmatpush1.msra.mxu0 0.0
    %715 = vmatprep.subr.mxu0 0.0
    %716 = vmatpush1.msra.mxu0 0.0
    %717 = vmatprep.subr.mxu0 0.0
    %718 = vmatpush1.msra.mxu0 0.0
    %719 = vmatprep.subr.mxu0 0.0
    %720 = vmatpush1.msra.mxu0 0.0
    %721 = vmatprep.subr.mxu0 0.0
    %722 = vmatpush1.msra.mxu0 0.0
    %723 = vmatprep.subr.mxu0 0.0
    %724 = vmatpush1.msra.mxu0 0.0
    %725 = vmatprep.subr.mxu0 0.0
    %726 = vmatpush1.msra.mxu0 0.0
    %727 = vmatprep.subr.mxu0 0.0
    %728 = vmatpush1.msra.mxu0 0.0
    %729 = vmatprep.subr.mxu0 0.0
    %730 = vmatpush1.msra.mxu0 0.0
    %731 = vmatprep.subr.mxu0 0.0
    %732 = vmatpush1.msra.mxu0 0.0
    %733 = vmatprep.subr.mxu0 0.0
    %734 = vmatpush1.msra.mxu0 0.0
    %735 = vmatprep.subr.mxu0 0.0
    %736 = vmatpush1.msra.mxu0 0.0
    %737 = vmatprep.subr.mxu0 0.0
    %738 = vmatpush1.msra.mxu0 0.0
    %739 = vmatprep.subr.mxu0 0.0
    %740 = vmatpush1.msra.mxu0 0.0
    %741 = vmatprep.subr.mxu0 0.0
    %742 = vmatpush1.msra.mxu0 0.0
    %743 = vmatprep.subr.mxu0 0.0
    %744 = vmatpush1.msra.mxu0 0.0
    %745 = vmatprep.subr.mxu0 0.0
    %746 = vmatpush1.msra.mxu0 0.0
    %747 = vmatprep.subr.mxu0 0.0
    %748 = vmatpush1.msra.mxu0 0.0
    %749 = vmatprep.subr.mxu0 0.0
    %750 = vmatpush1.msra.mxu0 0.0
    %751 = vmatprep.subr.mxu0 0.0
    %752 = vmatpush1.msra.mxu0 0.0
    %753 = vmatprep.subr.mxu0 0.0
    %754 = vmatpush1.msra.mxu0 0.0
    %755 = vmatprep.subr.mxu0 0.0
    %756 = vmatpush1.msra.mxu0 0.0
    %757 = vmatprep.subr.mxu0 0.0
    %758 = vmatpush1.msra.mxu0 0.0
    %759 = vmatprep.subr.mxu0 0.0
    %760 = vmatpush1.msra.mxu0 0.0
    %761 = vmatprep.subr.mxu0 0.0
    %762 = vmatpush1.msra.mxu0 0.0
    %763 = vmatprep.subr.mxu0 0.0
    %764 = vmatpush1.msra.mxu0 0.0
    %765 = vmatprep.mubr.f32.mxu0 0.0
    %766 = vmatmul.mubr.f32.gmra.mrb[0].mxu0 %v628
    %v767 = vpop.f32.mrb[0].mxu0
    %v768 = vadd.f32 0.0, %v767
    %v769 = vpop.f32.mrb[0].mxu0
    %v770 = vadd.f32 0.0, %v769
    %771 = vdwg.mxu0
    %v776 = vrot.slane %v697, 5
    %v777 = vrot.slane %v699, 5
    %v778 = vrot.slane %v768, 5
    %v779 = vrot.slane %v770, 5
    %v784 = vadd.f32 %v82, %v776
    %v785 = vadd.f32 %v83, %v777
    %v786 = vadd.f32 %v84, %v778
    %v787 = vadd.f32 %v85, %v779
    %v788 = vtanh.pop %v784
    %v789 = vtanh.pop %v785
    %v790 = vtanh.pop %v786
    %v791 = vtanh.pop %v787
    %v792 = vmul.f32 %v788, 0.5
    %v793 = vmul.f32 %v789, 0.5
    %v794 = vmul.f32 %v790, 0.5
    %v795 = vadd.f32 %v792, 0.5
    %v796 = vadd.f32 %v793, 0.5
    %v797 = vadd.f32 %v794, 0.5
    %v799 = vrot.slane %v623, 7
    %v801 = vmul.f32 %v796, %v799
    %v802 = vmul.f32 %v795, %v791
    %v803 = vadd.f32 %v801, %v802
    %v804 = vtanh.pop %v803
    %v805 = vmul.f32 %v797, %v804
    %v807 = vrot.slane %v805, 3
    %v808 = vsel %vm102, %v807, 0
    %810 = vmatprep.subr.mxu0 %v87
    %811 = vmatpush1.msra.mxu0 %v86
    %812 = vmatprep.subr.mxu0 %v91
    %813 = vmatpush1.msra.mxu0 %v90
    %814 = vmatprep.subr.mxu0 %v95
    %815 = vmatpush1.msra.mxu0 %v94
    %816 = vmatprep.subr.mxu0 %v99
    %817 = vmatpush1.msra.mxu0 %v98
    %818 = vmatprep.subr.mxu0 0.0
    %819 = vmatpush1.msra.mxu0 0.0
    %820 = vmatprep.subr.mxu0 0.0
    %821 = vmatpush1.msra.mxu0 0.0
    %822 = vmatprep.subr.mxu0 0.0
    %823 = vmatpush1.msra.mxu0 0.0
    %824 = vmatprep.subr.mxu0 0.0
    %825 = vmatpush1.msra.mxu0 0.0
    %826 = vmatprep.subr.mxu0 0.0
    %827 = vmatpush1.msra.mxu0 0.0
    %828 = vmatprep.subr.mxu0 0.0
    %829 = vmatpush1.msra.mxu0 0.0
    %830 = vmatprep.subr.mxu0 0.0
    %831 = vmatpush1.msra.mxu0 0.0
    %832 = vmatprep.subr.mxu0 0.0
    %833 = vmatpush1.msra.mxu0 0.0
    %834 = vmatprep.subr.mxu0 0.0
    %835 = vmatpush1.msra.mxu0 0.0
    %836 = vmatprep.subr.mxu0 0.0
    %837 = vmatpush1.msra.mxu0 0.0
    %838 = vmatprep.subr.mxu0 0.0
    %839 = vmatpush1.msra.mxu0 0.0
    %840 = vmatprep.subr.mxu0 0.0
    %841 = vmatpush1.msra.mxu0 0.0
    %842 = vmatprep.subr.mxu0 0.0
    %843 = vmatpush1.msra.mxu0 0.0
    %844 = vmatprep.subr.mxu0 0.0
    %845 = vmatpush1.msra.mxu0 0.0
    %846 = vmatprep.subr.mxu0 0.0
    %847 = vmatpush1.msra.mxu0 0.0
    %848 = vmatprep.subr.mxu0 0.0
    %849 = vmatpush1.msra.mxu0 0.0
    %850 = vmatprep.subr.mxu0 0.0
    %851 = vmatpush1.msra.mxu0 0.0
    %852 = vmatprep.subr.mxu0 0.0
    %853 = vmatpush1.msra.mxu0 0.0
    %854 = vmatprep.subr.mxu0 0.0
    %855 = vmatpush1.msra.mxu0 0.0
    %856 = vmatprep.subr.mxu0 0.0
    %857 = vmatpush1.msra.mxu0 0.0
    %858 = vmatprep.subr.mxu0 0.0
    %859 = vmatpush1.msra.mxu0 0.0
    %860 = vmatprep.subr.mxu0 0.0
    %861 = vmatpush1.msra.mxu0 0.0
    %862 = vmatprep.subr.mxu0 0.0
    %863 = vmatpush1.msra.mxu0 0.0
    %864 = vmatprep.subr.mxu0 0.0
    %865 = vmatpush1.msra.mxu0 0.0
    %866 = vmatprep.subr.mxu0 0.0
    %867 = vmatpush1.msra.mxu0 0.0
    %868 = vmatprep.subr.mxu0 0.0
    %869 = vmatpush1.msra.mxu0 0.0
    %870 = vmatprep.subr.mxu0 0.0
    %871 = vmatpush1.msra.mxu0 0.0
    %872 = vmatprep.subr.mxu0 0.0
    %873 = vmatpush1.msra.mxu0 0.0
    %874 = vmatprep.mubr.f32.mxu0 0.0
    %875 = vmatmul.mubr.f32.gmra.mrb[0].mxu0 %v808
    %v876 = vpop.f32.mrb[0].mxu0
    %v877 = vadd.f32 0.0, %v876
    %v878 = vpop.f32.mrb[0].mxu0
    %v879 = vadd.f32 0.0, %v878
    %880 = vdwg.mxu0
    %881 = vmatprep.subr.mxu0 %v89
    %882 = vmatpush1.msra.mxu0 %v88
    %883 = vmatprep.subr.mxu0 %v93
    %884 = vmatpush1.msra.mxu0 %v92
    %885 = vmatprep.subr.mxu0 %v97
    %886 = vmatpush1.msra.mxu0 %v96
    %887 = vmatprep.subr.mxu0 %v101
    %888 = vmatpush1.msra.mxu0 %v100
    %889 = vmatprep.subr.mxu0 0.0
    %890 = vmatpush1.msra.mxu0 0.0
    %891 = vmatprep.subr.mxu0 0.0
    %892 = vmatpush1.msra.mxu0 0.0
    %893 = vmatprep.subr.mxu0 0.0
    %894 = vmatpush1.msra.mxu0 0.0
    %895 = vmatprep.subr.mxu0 0.0
    %896 = vmatpush1.msra.mxu0 0.0
    %897 = vmatprep.subr.mxu0 0.0
    %898 = vmatpush1.msra.mxu0 0.0
    %899 = vmatprep.subr.mxu0 0.0
    %900 = vmatpush1.msra.mxu0 0.0
    %901 = vmatprep.subr.mxu0 0.0
    %902 = vmatpush1.msra.mxu0 0.0
    %903 = vmatprep.subr.mxu0 0.0
    %904 = vmatpush1.msra.mxu0 0.0
    %905 = vmatprep.subr.mxu0 0.0
    %906 = vmatpush1.msra.mxu0 0.0
    %907 = vmatprep.subr.mxu0 0.0
    %908 = vmatpush1.msra.mxu0 0.0
    %909 = vmatprep.subr.mxu0 0.0
    %910 = vmatpush1.msra.mxu0 0.0
    %911 = vmatprep.subr.mxu0 0.0
    %912 = vmatpush1.msra.mxu0 0.0
    %913 = vmatprep.subr.mxu0 0.0
    %914 = vmatpush1.msra.mxu0 0.0
    %915 = vmatprep.subr.mxu0 0.0
    %916 = vmatpush1.msra.mxu0 0.0
    %917 = vmatprep.subr.mxu0 0.0
    %918 = vmatpush1.msra.mxu0 0.0
    %919 = vmatprep.subr.mxu0 0.0
    %920 = vmatpush1.msra.mxu0 0.0
    %921 = vmatprep.subr.mxu0 0.0
    %922 = vmatpush1.msra.mxu0 0.0
    %923 = vmatprep.subr.mxu0 0.0
    %924 = vmatpush1.msra.mxu0 0.0
    %925 = vmatprep.subr.mxu0 0.0
    %926 = vmatpush1.msra.mxu0 0.0
    %927 = vmatprep.subr.mxu0 0.0
    %928 = vmatpush1.msra.mxu0 0.0
    %929 = vmatprep.subr.mxu0 0.0
    %930 = vmatpush1.msra.mxu0 0.0
    %931 = vmatprep.subr.mxu0 0.0
    %932 = vmatpush1.msra.mxu0 0.0
    %933 = vmatprep.subr.mxu0 0.0
    %934 = vmatpush1.msra.mxu0 0.0
    %935 = vmatprep.subr.mxu0 0.0
    %936 = vmatpush1.msra.mxu0 0.0
    %937 = vmatprep.subr.mxu0 0.0
    %938 = vmatpush1.msra.mxu0 0.0
    %939 = vmatprep.subr.mxu0 0.0
    %940 = vmatpush1.msra.mxu0 0.0
    %941 = vmatprep.subr.mxu0 0.0
    %942 = vmatpush1.msra.mxu0 0.0
    %943 = vmatprep.subr.mxu0 0.0
    %944 = vmatpush1.msra.mxu0 0.0
    %945 = vmatprep.mubr.f32.mxu0 0.0
    %946 = vmatmul.mubr.f32.gmra.mrb[0].mxu0 %v808
    %v947 = vpop.f32.mrb[0].mxu0
    %v948 = vadd.f32 0.0, %v947
    %v949 = vpop.f32.mrb[0].mxu0
    %v950 = vadd.f32 0.0, %v949
    %951 = vdwg.mxu0
    %v956 = vrot.slane %v877, 4
    %v957 = vrot.slane %v879, 4
    %v958 = vrot.slane %v948, 4
    %v959 = vrot.slane %v950, 4
    %v964 = vadd.f32 %v82, %v956
    %v965 = vadd.f32 %v83, %v957
    %v966 = vadd.f32 %v84, %v958
    %v967 = vadd.f32 %v85, %v959
    %v968 = vtanh.pop %v964
    %v969 = vtanh.pop %v965
    %v970 = vtanh.pop %v966
    %v971 = vtanh.pop %v967
    %v972 = vmul.f32 %v968, 0.5
    %v973 = vmul.f32 %v969, 0.5
    %v974 = vmul.f32 %v970, 0.5
    %v975 = vadd.f32 %v972, 0.5
    %v976 = vadd.f32 %v973, 0.5
    %v977 = vadd.f32 %v974, 0.5
    %v979 = vrot.slane %v803, 7
    %v981 = vmul.f32 %v976, %v979
    %v982 = vmul.f32 %v975, %v971
    %v983 = vadd.f32 %v981, %v982
    %v984 = vtanh.pop %v983
    %v985 = vmul.f32 %v977, %v984
    %v987 = vrot.slane %v985, 4
    %v988 = vsel %vm102, %v987, 0
    %990 = vmatprep.subr.mxu0 %v87
    %991 = vmatpush1.msra.mxu0 %v86
    %992 = vmatprep.subr.mxu0 %v91
    %993 = vmatpush1.msra.mxu0 %v90
    %994 = vmatprep.subr.mxu0 %v95
    %995 = vmatpush1.msra.mxu0 %v94
    %996 = vmatprep.subr.mxu0 %v99
    %997 = vmatpush1.msra.mxu0 %v98
    %998 = vmatprep.subr.mxu0 0.0
    %999 = vmatpush1.msra.mxu0 0.0
    %1000 = vmatprep.subr.mxu0 0.0
    %1001 = vmatpush1.msra.mxu0 0.0
    %1002 = vmatprep.subr.mxu0 0.0
    %1003 = vmatpush1.msra.mxu0 0.0
    %1004 = vmatprep.subr.mxu0 0.0
    %1005 = vmatpush1.msra.mxu0 0.0
    %1006 = vmatprep.subr.mxu0 0.0
    %1007 = vmatpush1.msra.mxu0 0.0
    %1008 = vmatprep.subr.mxu0 0.0
    %1009 = vmatpush1.msra.mxu0 0.0
    %1010 = vmatprep.subr.mxu0 0.0
    %1011 = vmatpush1.msra.mxu0 0.0
    %1012 = vmatprep.subr.mxu0 0.0
    %1013 = vmatpush1.msra.mxu0 0.0
    %1014 = vmatprep.subr.mxu0 0.0
    %1015 = vmatpush1.msra.mxu0 0.0
    %1016 = vmatprep.subr.mxu0 0.0
    %1017 = vmatpush1.msra.mxu0 0.0
    %1018 = vmatprep.subr.mxu0 0.0
    %1019 = vmatpush1.msra.mxu0 0.0
    %1020 = vmatprep.subr.mxu0 0.0
    %1021 = vmatpush1.msra.mxu0 0.0
    %1022 = vmatprep.subr.mxu0 0.0
    %1023 = vmatpush1.msra.mxu0 0.0
    %1024 = vmatprep.subr.mxu0 0.0
    %1025 = vmatpush1.msra.mxu0 0.0
    %1026 = vmatprep.subr.mxu0 0.0
    %1027 = vmatpush1.msra.mxu0 0.0
    %1028 = vmatprep.subr.mxu0 0.0
    %1029 = vmatpush1.msra.mxu0 0.0
    %1030 = vmatprep.subr.mxu0 0.0
    %1031 = vmatpush1.msra.mxu0 0.0
    %1032 = vmatprep.subr.mxu0 0.0
    %1033 = vmatpush1.msra.mxu0 0.0
    %1034 = vmatprep.subr.mxu0 0.0
    %1035 = vmatpush1.msra.mxu0 0.0
    %1036 = vmatprep.subr.mxu0 0.0
    %1037 = vmatpush1.msra.mxu0 0.0
    %1038 = vmatprep.subr.mxu0 0.0
    %1039 = vmatpush1.msra.mxu0 0.0
    %1040 = vmatprep.subr.mxu0 0.0
    %1041 = vmatpush1.msra.mxu0 0.0
    %1042 = vmatprep.subr.mxu0 0.0
    %1043 = vmatpush1.msra.mxu0 0.0
    %1044 = vmatprep.subr.mxu0 0.0
    %1045 = vmatpush1.msra.mxu0 0.0
    %1046 = vmatprep.subr.mxu0 0.0
    %1047 = vmatpush1.msra.mxu0 0.0
    %1048 = vmatprep.subr.mxu0 0.0
    %1049 = vmatpush1.msra.mxu0 0.0
    %1050 = vmatprep.subr.mxu0 0.0
    %1051 = vmatpush1.msra.mxu0 0.0
    %1052 = vmatprep.subr.mxu0 0.0
    %1053 = vmatpush1.msra.mxu0 0.0
    %1054 = vmatprep.mubr.f32.mxu0 0.0
    %1055 = vmatmul.mubr.f32.gmra.mrb[0].mxu0 %v988
    %v1056 = vpop.f32.mrb[0].mxu0
    %v1057 = vadd.f32 0.0, %v1056
    %v1058 = vpop.f32.mrb[0].mxu0
    %v1059 = vadd.f32 0.0, %v1058
    %1060 = vdwg.mxu0
    %1061 = vmatprep.subr.mxu0 %v89
    %1062 = vmatpush1.msra.mxu0 %v88
    %1063 = vmatprep.subr.mxu0 %v93
    %1064 = vmatpush1.msra.mxu0 %v92
    %1065 = vmatprep.subr.mxu0 %v97
    %1066 = vmatpush1.msra.mxu0 %v96
    %1067 = vmatprep.subr.mxu0 %v101
    %1068 = vmatpush1.msra.mxu0 %v100
    %1069 = vmatprep.subr.mxu0 0.0
    %1070 = vmatpush1.msra.mxu0 0.0
    %1071 = vmatprep.subr.mxu0 0.0
    %1072 = vmatpush1.msra.mxu0 0.0
    %1073 = vmatprep.subr.mxu0 0.0
    %1074 = vmatpush1.msra.mxu0 0.0
    %1075 = vmatprep.subr.mxu0 0.0
    %1076 = vmatpush1.msra.mxu0 0.0
    %1077 = vmatprep.subr.mxu0 0.0
    %1078 = vmatpush1.msra.mxu0 0.0
    %1079 = vmatprep.subr.mxu0 0.0
    %1080 = vmatpush1.msra.mxu0 0.0
    %1081 = vmatprep.subr.mxu0 0.0
    %1082 = vmatpush1.msra.mxu0 0.0
    %1083 = vmatprep.subr.mxu0 0.0
    %1084 = vmatpush1.msra.mxu0 0.0
    %1085 = vmatprep.subr.mxu0 0.0
    %1086 = vmatpush1.msra.mxu0 0.0
    %1087 = vmatprep.subr.mxu0 0.0
    %1088 = vmatpush1.msra.mxu0 0.0
    %1089 = vmatprep.subr.mxu0 0.0
    %1090 = vmatpush1.msra.mxu0 0.0
    %1091 = vmatprep.subr.mxu0 0.0
    %1092 = vmatpush1.msra.mxu0 0.0
    %1093 = vmatprep.subr.mxu0 0.0
    %1094 = vmatpush1.msra.mxu0 0.0
    %1095 = vmatprep.subr.mxu0 0.0
    %1096 = vmatpush1.msra.mxu0 0.0
    %1097 = vmatprep.subr.mxu0 0.0
    %1098 = vmatpush1.msra.mxu0 0.0
    %1099 = vmatprep.subr.mxu0 0.0
    %1100 = vmatpush1.msra.mxu0 0.0
    %1101 = vmatprep.subr.mxu0 0.0
    %1102 = vmatpush1.msra.mxu0 0.0
    %1103 = vmatprep.subr.mxu0 0.0
    %1104 = vmatpush1.msra.mxu0 0.0
    %1105 = vmatprep.subr.mxu0 0.0
    %1106 = vmatpush1.msra.mxu0 0.0
    %1107 = vmatprep.subr.mxu0 0.0
    %1108 = vmatpush1.msra.mxu0 0.0
    %1109 = vmatprep.subr.mxu0 0.0
    %1110 = vmatpush1.msra.mxu0 0.0
    %1111 = vmatprep.subr.mxu0 0.0
    %1112 = vmatpush1.msra.mxu0 0.0
    %1113 = vmatprep.subr.mxu0 0.0
    %1114 = vmatpush1.msra.mxu0 0.0
    %1115 = vmatprep.subr.mxu0 0.0
    %1116 = vmatpush1.msra.mxu0 0.0
    %1117 = vmatprep.subr.mxu0 0.0
    %1118 = vmatpush1.msra.mxu0 0.0
    %1119 = vmatprep.subr.mxu0 0.0
    %1120 = vmatpush1.msra.mxu0 0.0
    %1121 = vmatprep.subr.mxu0 0.0
    %1122 = vmatpush1.msra.mxu0 0.0
    %1123 = vmatprep.subr.mxu0 0.0
    %1124 = vmatpush1.msra.mxu0 0.0
    %1125 = vmatprep.mubr.f32.mxu0 0.0
    %1126 = vmatmul.mubr.f32.gmra.mrb[0].mxu0 %v988
    %v1127 = vpop.f32.mrb[0].mxu0
    %v1128 = vadd.f32 0.0, %v1127
    %v1129 = vpop.f32.mrb[0].mxu0
    %v1130 = vadd.f32 0.0, %v1129
    %1131 = vdwg.mxu0
    %v1136 = vrot.slane %v1057, 3
    %v1137 = vrot.slane %v1059, 3
    %v1138 = vrot.slane %v1128, 3
    %v1139 = vrot.slane %v1130, 3
    %v1144 = vadd.f32 %v82, %v1136
    %v1145 = vadd.f32 %v83, %v1137
    %v1146 = vadd.f32 %v84, %v1138
    %v1147 = vadd.f32 %v85, %v1139
    %v1148 = vtanh.pop %v1144
    %v1149 = vtanh.pop %v1145
    %v1150 = vtanh.pop %v1146
    %v1151 = vtanh.pop %v1147
    %v1152 = vmul.f32 %v1148, 0.5
    %v1153 = vmul.f32 %v1149, 0.5
    %v1154 = vmul.f32 %v1150, 0.5
    %v1155 = vadd.f32 %v1152, 0.5
    %v1156 = vadd.f32 %v1153, 0.5
    %v1157 = vadd.f32 %v1154, 0.5
    %v1159 = vrot.slane %v983, 7
    %v1161 = vmul.f32 %v1156, %v1159
    %v1162 = vmul.f32 %v1155, %v1151
    %v1163 = vadd.f32 %v1161, %v1162
    %v1164 = vtanh.pop %v1163
    %v1165 = vmul.f32 %v1157, %v1164
    %v1167 = vrot.slane %v1165, 5
    %v1168 = vsel %vm102, %v1167, 0
    %1170 = vmatprep.subr.mxu0 %v87
    %1171 = vmatpush1.msra.mxu0 %v86
    %1172 = vmatprep.subr.mxu0 %v91
    %1173 = vmatpush1.msra.mxu0 %v90
    %1174 = vmatprep.subr.mxu0 %v95
    %1175 = vmatpush1.msra.mxu0 %v94
    %1176 = vmatprep.subr.mxu0 %v99
    %1177 = vmatpush1.msra.mxu0 %v98
    %1178 = vmatprep.subr.mxu0 0.0
    %1179 = vmatpush1.msra.mxu0 0.0
    %1180 = vmatprep.subr.mxu0 0.0
    %1181 = vmatpush1.msra.mxu0 0.0
    %1182 = vmatprep.subr.mxu0 0.0
    %1183 = vmatpush1.msra.mxu0 0.0
    %1184 = vmatprep.subr.mxu0 0.0
    %1185 = vmatpush1.msra.mxu0 0.0
    %1186 = vmatprep.subr.mxu0 0.0
    %1187 = vmatpush1.msra.mxu0 0.0
    %1188 = vmatprep.subr.mxu0 0.0
    %1189 = vmatpush1.msra.mxu0 0.0
    %1190 = vmatprep.subr.mxu0 0.0
    %1191 = vmatpush1.msra.mxu0 0.0
    %1192 = vmatprep.subr.mxu0 0.0
    %1193 = vmatpush1.msra.mxu0 0.0
    %1194 = vmatprep.subr.mxu0 0.0
    %1195 = vmatpush1.msra.mxu0 0.0
    %1196 = vmatprep.subr.mxu0 0.0
    %1197 = vmatpush1.msra.mxu0 0.0
    %1198 = vmatprep.subr.mxu0 0.0
    %1199 = vmatpush1.msra.mxu0 0.0
    %1200 = vmatprep.subr.mxu0 0.0
    %1201 = vmatpush1.msra.mxu0 0.0
    %1202 = vmatprep.subr.mxu0 0.0
    %1203 = vmatpush1.msra.mxu0 0.0
    %1204 = vmatprep.subr.mxu0 0.0
    %1205 = vmatpush1.msra.mxu0 0.0
    %1206 = vmatprep.subr.mxu0 0.0
    %1207 = vmatpush1.msra.mxu0 0.0
    %1208 = vmatprep.subr.mxu0 0.0
    %1209 = vmatpush1.msra.mxu0 0.0
    %1210 = vmatprep.subr.mxu0 0.0
    %1211 = vmatpush1.msra.mxu0 0.0
    %1212 = vmatprep.subr.mxu0 0.0
    %1213 = vmatpush1.msra.mxu0 0.0
    %1214 = vmatprep.subr.mxu0 0.0
    %1215 = vmatpush1.msra.mxu0 0.0
    %1216 = vmatprep.subr.mxu0 0.0
    %1217 = vmatpush1.msra.mxu0 0.0
    %1218 = vmatprep.subr.mxu0 0.0
    %1219 = vmatpush1.msra.mxu0 0.0
    %1220 = vmatprep.subr.mxu0 0.0
    %1221 = vmatpush1.msra.mxu0 0.0
    %1222 = vmatprep.subr.mxu0 0.0
    %1223 = vmatpush1.msra.mxu0 0.0
    %1224 = vmatprep.subr.mxu0 0.0
    %1225 = vmatpush1.msra.mxu0 0.0
    %1226 = vmatprep.subr.mxu0 0.0
    %1227 = vmatpush1.msra.mxu0 0.0
    %1228 = vmatprep.subr.mxu0 0.0
    %1229 = vmatpush1.msra.mxu0 0.0
    %1230 = vmatprep.subr.mxu0 0.0
    %1231 = vmatpush1.msra.mxu0 0.0
    %1232 = vmatprep.subr.mxu0 0.0
    %1233 = vmatpush1.msra.mxu0 0.0
    %1234 = vmatprep.mubr.f32.mxu0 0.0
    %1235 = vmatmul.mubr.f32.gmra.mrb[0].mxu0 %v1168
    %v1236 = vpop.f32.mrb[0].mxu0
    %v1237 = vadd.f32 0.0, %v1236
    %v1238 = vpop.f32.mrb[0].mxu0
    %v1239 = vadd.f32 0.0, %v1238
    %1240 = vdwg.mxu0
    %1241 = vmatprep.subr.mxu0 %v89
    %1242 = vmatpush1.msra.mxu0 %v88
    %1243 = vmatprep.subr.mxu0 %v93
    %1244 = vmatpush1.msra.mxu0 %v92
    %1245 = vmatprep.subr.mxu0 %v97
    %1246 = vmatpush1.msra.mxu0 %v96
    %1247 = vmatprep.subr.mxu0 %v101
    %1248 = vmatpush1.msra.mxu0 %v100
    %1249 = vmatprep.subr.mxu0 0.0
    %1250 = vmatpush1.msra.mxu0 0.0
    %1251 = vmatprep.subr.mxu0 0.0
    %1252 = vmatpush1.msra.mxu0 0.0
    %1253 = vmatprep.subr.mxu0 0.0
    %1254 = vmatpush1.msra.mxu0 0.0
    %1255 = vmatprep.subr.mxu0 0.0
    %1256 = vmatpush1.msra.mxu0 0.0
    %1257 = vmatprep.subr.mxu0 0.0
    %1258 = vmatpush1.msra.mxu0 0.0
    %1259 = vmatprep.subr.mxu0 0.0
    %1260 = vmatpush1.msra.mxu0 0.0
    %1261 = vmatprep.subr.mxu0 0.0
    %1262 = vmatpush1.msra.mxu0 0.0
    %1263 = vmatprep.subr.mxu0 0.0
    %1264 = vmatpush1.msra.mxu0 0.0
    %1265 = vmatprep.subr.mxu0 0.0
    %1266 = vmatpush1.msra.mxu0 0.0
    %1267 = vmatprep.subr.mxu0 0.0
    %1268 = vmatpush1.msra.mxu0 0.0
    %1269 = vmatprep.subr.mxu0 0.0
    %1270 = vmatpush1.msra.mxu0 0.0
    %1271 = vmatprep.subr.mxu0 0.0
    %1272 = vmatpush1.msra.mxu0 0.0
    %1273 = vmatprep.subr.mxu0 0.0
    %1274 = vmatpush1.msra.mxu0 0.0
    %1275 = vmatprep.subr.mxu0 0.0
    %1276 = vmatpush1.msra.mxu0 0.0
    %1277 = vmatprep.subr.mxu0 0.0
    %1278 = vmatpush1.msra.mxu0 0.0
    %1279 = vmatprep.subr.mxu0 0.0
    %1280 = vmatpush1.msra.mxu0 0.0
    %1281 = vmatprep.subr.mxu0 0.0
    %1282 = vmatpush1.msra.mxu0 0.0
    %1283 = vmatprep.subr.mxu0 0.0
    %1284 = vmatpush1.msra.mxu0 0.0
    %1285 = vmatprep.subr.mxu0 0.0
    %1286 = vmatpush1.msra.mxu0 0.0
    %1287 = vmatprep.subr.mxu0 0.0
    %1288 = vmatpush1.msra.mxu0 0.0
    %1289 = vmatprep.subr.mxu0 0.0
    %1290 = vmatpush1.msra.mxu0 0.0
    %1291 = vmatprep.subr.mxu0 0.0
    %1292 = vmatpush1.msra.mxu0 0.0
    %1293 = vmatprep.subr.mxu0 0.0
    %1294 = vmatpush1.msra.mxu0 0.0
    %1295 = vmatprep.subr.mxu0 0.0
    %1296 = vmatpush1.msra.mxu0 0.0
    %1297 = vmatprep.subr.mxu0 0.0
    %1298 = vmatpush1.msra.mxu0 0.0
    %1299 = vmatprep.subr.mxu0 0.0
    %1300 = vmatpush1.msra.mxu0 0.0
    %1301 = vmatprep.subr.mxu0 0.0
    %1302 = vmatpush1.msra.mxu0 0.0
    %1303 = vmatprep.subr.mxu0 0.0
    %1304 = vmatpush1.msra.mxu0 0.0
    %1305 = vmatprep.mubr.f32.mxu0 0.0
    %1306 = vmatmul.mubr.f32.gmra.mrb[0].mxu0 %v1168
    %v1307 = vpop.f32.mrb[0].mxu0
    %v1308 = vadd.f32 0.0, %v1307
    %v1309 = vpop.f32.mrb[0].mxu0
    %v1310 = vadd.f32 0.0, %v1309
    %1311 = vdwg.mxu0
    %v1316 = vrot.slane %v1237, 2
    %v1317 = vrot.slane %v1239, 2
    %v1318 = vrot.slane %v1308, 2
    %v1319 = vrot.slane %v1310, 2
    %v1324 = vadd.f32 %v82, %v1316
    %v1325 = vadd.f32 %v83, %v1317
    %v1326 = vadd.f32 %v84, %v1318
    %v1327 = vadd.f32 %v85, %v1319
    %v1328 = vtanh.pop %v1324
    %v1329 = vtanh.pop %v1325
    %v1330 = vtanh.pop %v1326
    %v1331 = vtanh.pop %v1327
    %v1332 = vmul.f32 %v1328, 0.5
    %v1333 = vmul.f32 %v1329, 0.5
    %v1334 = vmul.f32 %v1330, 0.5
    %v1335 = vadd.f32 %v1332, 0.5
    %v1336 = vadd.f32 %v1333, 0.5
    %v1337 = vadd.f32 %v1334, 0.5
    %v1339 = vrot.slane %v1163, 7
    %v1341 = vmul.f32 %v1336, %v1339
    %v1342 = vmul.f32 %v1335, %v1331
    %v1343 = vadd.f32 %v1341, %v1342
    %v1344 = vtanh.pop %v1343
    %v1345 = vmul.f32 %v1337, %v1344
    %v1347 = vrot.slane %v1345, 6
    %v1348 = vsel %vm102, %v1347, 0
    %1350 = vmatprep.subr.mxu0 %v87
    %1351 = vmatpush1.msra.mxu0 %v86
    %1352 = vmatprep.subr.mxu0 %v91
    %1353 = vmatpush1.msra.mxu0 %v90
    %1354 = vmatprep.subr.mxu0 %v95
    %1355 = vmatpush1.msra.mxu0 %v94
    %1356 = vmatprep.subr.mxu0 %v99
    %1357 = vmatpush1.msra.mxu0 %v98
    %1358 = vmatprep.subr.mxu0 0.0
    %1359 = vmatpush1.msra.mxu0 0.0
    %1360 = vmatprep.subr.mxu0 0.0
    %1361 = vmatpush1.msra.mxu0 0.0
    %1362 = vmatprep.subr.mxu0 0.0
    %1363 = vmatpush1.msra.mxu0 0.0
    %1364 = vmatprep.subr.mxu0 0.0
    %1365 = vmatpush1.msra.mxu0 0.0
    %1366 = vmatprep.subr.mxu0 0.0
    %1367 = vmatpush1.msra.mxu0 0.0
    %1368 = vmatprep.subr.mxu0 0.0
    %1369 = vmatpush1.msra.mxu0 0.0
    %1370 = vmatprep.subr.mxu0 0.0
    %1371 = vmatpush1.msra.mxu0 0.0
    %1372 = vmatprep.subr.mxu0 0.0
    %1373 = vmatpush1.msra.mxu0 0.0
    %1374 = vmatprep.subr.mxu0 0.0
    %1375 = vmatpush1.msra.mxu0 0.0
    %1376 = vmatprep.subr.mxu0 0.0
    %1377 = vmatpush1.msra.mxu0 0.0
    %1378 = vmatprep.subr.mxu0 0.0
    %1379 = vmatpush1.msra.mxu0 0.0
    %1380 = vmatprep.subr.mxu0 0.0
    %1381 = vmatpush1.msra.mxu0 0.0
    %1382 = vmatprep.subr.mxu0 0.0
    %1383 = vmatpush1.msra.mxu0 0.0
    %1384 = vmatprep.subr.mxu0 0.0
    %1385 = vmatpush1.msra.mxu0 0.0
    %1386 = vmatprep.subr.mxu0 0.0
    %1387 = vmatpush1.msra.mxu0 0.0
    %1388 = vmatprep.subr.mxu0 0.0
    %1389 = vmatpush1.msra.mxu0 0.0
    %1390 = vmatprep.subr.mxu0 0.0
    %1391 = vmatpush1.msra.mxu0 0.0
    %1392 = vmatprep.subr.mxu0 0.0
    %1393 = vmatpush1.msra.mxu0 0.0
    %1394 = vmatprep.subr.mxu0 0.0
    %1395 = vmatpush1.msra.mxu0 0.0
    %1396 = vmatprep.subr.mxu0 0.0
    %1397 = vmatpush1.msra.mxu0 0.0
    %1398 = vmatprep.subr.mxu0 0.0
    %1399 = vmatpush1.msra.mxu0 0.0
    %1400 = vmatprep.subr.mxu0 0.0
    %1401 = vmatpush1.msra.mxu0 0.0
    %1402 = vmatprep.subr.mxu0 0.0
    %1403 = vmatpush1.msra.mxu0 0.0
    %1404 = vmatprep.subr.mxu0 0.0
    %1405 = vmatpush1.msra.mxu0 0.0
    %1406 = vmatprep.subr.mxu0 0.0
    %1407 = vmatpush1.msra.mxu0 0.0
    %1408 = vmatprep.subr.mxu0 0.0
    %1409 = vmatpush1.msra.mxu0 0.0
    %1410 = vmatprep.subr.mxu0 0.0
    %1411 = vmatpush1.msra.mxu0 0.0
    %1412 = vmatprep.subr.mxu0 0.0
    %1413 = vmatpush1.msra.mxu0 0.0
    %1414 = vmatprep.mubr.f32.mxu0 0.0
    %1415 = vmatmul.mubr.f32.gmra.mrb[0].mxu0 %v1348
    %v1416 = vpop.f32.mrb[0].mxu0
    %v1417 = vadd.f32 0.0, %v1416
    %v1418 = vpop.f32.mrb[0].mxu0
    %v1419 = vadd.f32 0.0, %v1418
    %1420 = vdwg.mxu0
    %1421 = vmatprep.subr.mxu0 %v89
    %1422 = vmatpush1.msra.mxu0 %v88
    %1423 = vmatprep.subr.mxu0 %v93
    %1424 = vmatpush1.msra.mxu0 %v92
    %1425 = vmatprep.subr.mxu0 %v97
    %1426 = vmatpush1.msra.mxu0 %v96
    %1427 = vmatprep.subr.mxu0 %v101
    %1428 = vmatpush1.msra.mxu0 %v100
    %1429 = vmatprep.subr.mxu0 0.0
    %1430 = vmatpush1.msra.mxu0 0.0
    %1431 = vmatprep.subr.mxu0 0.0
    %1432 = vmatpush1.msra.mxu0 0.0
    %1433 = vmatprep.subr.mxu0 0.0
    %1434 = vmatpush1.msra.mxu0 0.0
    %1435 = vmatprep.subr.mxu0 0.0
    %1436 = vmatpush1.msra.mxu0 0.0
    %1437 = vmatprep.subr.mxu0 0.0
    %1438 = vmatpush1.msra.mxu0 0.0
    %1439 = vmatprep.subr.mxu0 0.0
    %1440 = vmatpush1.msra.mxu0 0.0
    %1441 = vmatprep.subr.mxu0 0.0
    %1442 = vmatpush1.msra.mxu0 0.0
    %1443 = vmatprep.subr.mxu0 0.0
    %1444 = vmatpush1.msra.mxu0 0.0
    %1445 = vmatprep.subr.mxu0 0.0
    %1446 = vmatpush1.msra.mxu0 0.0
    %1447 = vmatprep.subr.mxu0 0.0
    %1448 = vmatpush1.msra.mxu0 0.0
    %1449 = vmatprep.subr.mxu0 0.0
    %1450 = vmatpush1.msra.mxu0 0.0
    %1451 = vmatprep.subr.mxu0 0.0
    %1452 = vmatpush1.msra.mxu0 0.0
    %1453 = vmatprep.subr.mxu0 0.0
    %1454 = vmatpush1.msra.mxu0 0.0
    %1455 = vmatprep.subr.mxu0 0.0
    %1456 = vmatpush1.msra.mxu0 0.0
    %1457 = vmatprep.subr.mxu0 0.0
    %1458 = vmatpush1.msra.mxu0 0.0
    %1459 = vmatprep.subr.mxu0 0.0
    %1460 = vmatpush1.msra.mxu0 0.0
    %1461 = vmatprep.subr.mxu0 0.0
    %1462 = vmatpush1.msra.mxu0 0.0
    %1463 = vmatprep.subr.mxu0 0.0
    %1464 = vmatpush1.msra.mxu0 0.0
    %1465 = vmatprep.subr.mxu0 0.0
    %1466 = vmatpush1.msra.mxu0 0.0
    %1467 = vmatprep.subr.mxu0 0.0
    %1468 = vmatpush1.msra.mxu0 0.0
    %1469 = vmatprep.subr.mxu0 0.0
    %1470 = vmatpush1.msra.mxu0 0.0
    %1471 = vmatprep.subr.mxu0 0.0
    %1472 = vmatpush1.msra.mxu0 0.0
    %1473 = vmatprep.subr.mxu0 0.0
    %1474 = vmatpush1.msra.mxu0 0.0
    %1475 = vmatprep.subr.mxu0 0.0
    %1476 = vmatpush1.msra.mxu0 0.0
    %1477 = vmatprep.subr.mxu0 0.0
    %1478 = vmatpush1.msra.mxu0 0.0
    %1479 = vmatprep.subr.mxu0 0.0
    %1480 = vmatpush1.msra.mxu0 0.0
    %1481 = vmatprep.subr.mxu0 0.0
    %1482 = vmatpush1.msra.mxu0 0.0
    %1483 = vmatprep.subr.mxu0 0.0
    %1484 = vmatpush1.msra.mxu0 0.0
    %1485 = vmatprep.mubr.f32.mxu0 0.0
    %1486 = vmatmul.mubr.f32.gmra.mrb[0].mxu0 %v1348
    %v1487 = vpop.f32.mrb[0].mxu0
    %v1488 = vadd.f32 0.0, %v1487
    %v1489 = vpop.f32.mrb[0].mxu0
    %v1490 = vadd.f32 0.0, %v1489
    %1491 = vdwg.mxu0
    %v1496 = vrot.slane %v1417, 1
    %v1497 = vrot.slane %v1419, 1
    %v1498 = vrot.slane %v1488, 1
    %v1499 = vrot.slane %v1490, 1
    %v1504 = vadd.f32 %v82, %v1496
    %v1505 = vadd.f32 %v83, %v1497
    %v1506 = vadd.f32 %v84, %v1498
    %v1507 = vadd.f32 %v85, %v1499
    %v1508 = vtanh.pop %v1504
    %v1509 = vtanh.pop %v1505
    %v1510 = vtanh.pop %v1506
    %v1511 = vtanh.pop %v1507
    %v1512 = vmul.f32 %v1508, 0.5
    %v1513 = vmul.f32 %v1509, 0.5
    %v1514 = vmul.f32 %v1510, 0.5
    %v1515 = vadd.f32 %v1512, 0.5
    %v1516 = vadd.f32 %v1513, 0.5
    %v1517 = vadd.f32 %v1514, 0.5
    %v1519 = vrot.slane %v1343, 7
    %v1521 = vmul.f32 %v1516, %v1519
    %v1522 = vmul.f32 %v1515, %v1511
    %v1523 = vadd.f32 %v1521, %v1522
    %v1524 = vtanh.pop %v1523
    %v1525 = vmul.f32 %v1517, %v1524
    %v1526 = vld [vmem:[#allocation2 + $0x82] ss:$0 sm:$0xff]
    %v1527 = vmul.f32 %v1525, %v1526
    %vm1528 = vcmask 1047559
    %v1529 = vsel %vm1528, %v1527, 0.0
    %1530 = vadd.xlane.f32.xlu0 %v1529
    %v1531 = vpop.xlane.xlu0 %1530
    %v1532 = vld [vmem:[#allocation2 + $0x83] ss:$0 sm:$0xff]
    %v1533 = vadd.f32 %v1531, %v1532
    %1534 = vst [vmem:[#allocation5 - $0x7] sm:$0x80] %v1533
    // Predicated region
    $region14: #{lstm_forward.1} parent=1 // pred_check
      _
    $region15: #{lstm_forward.1} parent=1 // pred_check_branch
      %1536 = sbr.rel (0) target = $region17
    $region16: #{lstm_forward.1} parent=1 // pred_region
      %s1538 = ssub.s32 16, 16
      %1539 = vsyncadd [#allocation4], %s1538
      %s1541 = sshll.u32 [#allocation5], 4
      %s1542 = int_to_ptr.vmem [resolvable:$true] %s1541
      %1544 = dma.vmem_to_hbm [thread:$0]  %s1542, 16, %s2, [#allocation4]
    $region17: #{lstm_forward.1} parent=1 // pred_fallthru
      _
    // Predicated region
    $region18: #{lstm_forward.1} parent=1 // pred_check
      _
    $region19: #{lstm_forward.1} parent=1 // pred_check_branch
      %1546 = sbr.rel (0) target = $region21
    $region20: #{lstm_forward.1} parent=1 // pred_region
      %1547 = dma.done [#allocation4], 16
    $region21: #{lstm_forward.1} parent=1 // pred_fallthru
      _
    %1548 = vsyncpa [#allocation3], 1
    %1549 = vsyncpa [#allocation4], 1

</llo_original>
